<compile_context>
chip_gen: v6e
topology: v6e:2x2x1
jax: 0.10.0
libtpu: 0.0.40
codegen_flags: <defaults>
</compile_context>

<pallas_src>
import functools

import jax
import jax.numpy as jnp
from jax.experimental import pallas as pl
from jax.experimental.pallas import tpu as pltpu


def _conv3x3_bias_relu_kernel(x_ref, xh_ref, w_ref, b_ref, o_ref, *,
                              apply_relu, cout):
    """One (batch, row-tile) step of a 3x3 / stride-1 conv + bias + ReLU.

    x_ref:  (1, TH, Wp, Cin)   bf16  rows [h*TH, h*TH+TH) of the padded image
    xh_ref: (1, 2,  Wp, Cin)   bf16  2-row bottom halo (padded rows +TH..+TH+2)
    w_ref:  (9, Cin, Coutp)    bf16  taps, leading index k = dx*3 + dy
    b_ref:  (1, Coutp)         f32   bias (zero-padded; zeros when bias=False)
    o_ref:  (1, Cout, TH*W)    f32   NCHW output tile (spatial flattened)
    """
    _, TH, Wp, Cin = x_ref.shape
    W = Wp - 2
    Coutp = w_ref.shape[-1]

    # Main slab + bottom halo -> one (TH+2, Wp, Cin) slab (leading-axis concat,
    # no lane/sublane data movement).
    xall = jnp.concatenate([x_ref[0], xh_ref[0]], axis=0)

    # 9 accumulating K=Cin matmuls (no im2col scratch -> no misaligned
    # Cin-wide column stores, ~9x less VMEM store traffic).  The 3 dx shifts
    # (sublane offsets) are hoisted and reused across the 3 dy taps; the dy
    # taps are cheap leading-axis slices.
    acc = jnp.zeros((TH * W, Coutp), jnp.float32)
    for dx in range(3):
        xs = xall[:, dx:dx + W, :]                       # (TH+2, W, Cin)
        for dy in range(3):
            a = xs[dy:dy + TH, :, :].reshape(TH * W, Cin)
            acc = acc + jnp.dot(a, w_ref[dx * 3 + dy],
                                preferred_element_type=jnp.float32)

    acc = acc + b_ref[...]                               # fused bias
    if apply_relu:                                       # fused ReLU
        acc = jnp.maximum(acc, 0.0)

    # Emit NCHW directly: one in-kernel XLU transpose replaces the old
    # post-kernel f32 HBM NHWC->NCHW transpose pass.  Both transpose dims are
    # multiples of 128 by construction; Cout padding is stripped here.
    acc_t = acc.T                                        # (Coutp, TH*W)
    o_ref[...] = acc_t[:cout, :].reshape(1, cout, TH * W).astype(o_ref.dtype)


def _step_vmem_bytes(TH, Wp, W_out, Cin, Cout_p):
    """Rough per-grid-step VMEM footprint (minor dims lane-padded to 128)."""
    LANE = 128
    cin_l = max(Cin, LANE)
    cout_l = max(Cout_p, LANE)
    hw = TH * W_out
    x_main = TH * Wp * cin_l * 2                 # bf16 main slab
    x_halo = 2 * Wp * cin_l * 2                  # bf16 halo
    w = 9 * Cin * cout_l * 2                     # bf16 weights
    bias = cout_l * 4
    out = Cout_p * max(hw, LANE) * 4             # f32 output tile
    dbuf = 2 * (x_main + x_halo + w + bias + out)   # pipeline double-buffers
    acc = hw * cout_l * 4                        # f32 accumulator value
    shifted = 3 * (TH + 2) * W_out * cin_l * 2   # dx-shifted slab temps
    return dbuf + acc + shifted


def _vmem_limit_bytes():
    cap = 64 * 1024 * 1024                       # conservative fallback (v7x)
    try:
        cap = int(pltpu.get_tpu_info().vmem_capacity_bytes)
    except Exception:
        pass
    return int(min(cap * 3 // 4, 96 * 1024 * 1024))   # 96 MiB v5e/v6e, 48 MiB v7x


def _pick_tile_rows(H_out, W_out, Wp, Cin, Cout_p, vmem_limit, max_rows=None):
    """Largest even divisor TH of H_out that keeps the output store lane-dense
    ((TH*W_out) % 128 == 0, or TH == H_out) and fits the VMEM budget."""
    cap = min(H_out, max_rows if max_rows else 64)
    cand = [th for th in range(2, cap + 1, 2)
            if H_out % th == 0 and ((th * W_out) % 128 == 0 or th == H_out)]
    budget = vmem_limit // 2
    fits = [th for th in cand
            if _step_vmem_bytes(th, Wp, W_out, Cin, Cout_p) <= budget]
    if fits:
        return max(fits)
    if cand:
        return min(cand)
    assert H_out % 2 == 0, "odd output heights are not supported"
    return H_out


def basic_conv_forward(x_nchw, weight_oihw, bias=None, *, stride=1, padding=1,
                       dilation=1, groups=1, relu=True, bn=False,
                       tile_rows=None, compute_dtype=jnp.bfloat16):
    """BasicConv forward (Conv2d 3x3 + optional bias + optional ReLU) on TPU."""
    # TODO(synk): only kernel_size=3, stride=1, dilation=1, groups=1 are
    # implemented; bn=True (BatchNorm2d) should be folded into weight/bias.
    assert stride == 1 and dilation == 1 and groups == 1 and not bn
    N, Cin, H, W = x_nchw.shape
    Cout, Cin_w, KH, KW = weight_oihw.shape
    assert (KH, KW) == (3, 3) and Cin_w == Cin

    H_out = H + 2 * padding - 2
    W_out = W + 2 * padding - 2
    Hp, Wp = H + 2 * padding, W + 2 * padding
    Coutp = -(-Cout // 128) * 128                # pad Cout -> multiple of 128

    vmem_limit = _vmem_limit_bytes()
    TH = _pick_tile_rows(H_out, W_out, Wp, Cin, Coutp, vmem_limit,
                         max_rows=tile_rows)
    assert H_out % TH == 0 and TH % 2 == 0, "unsupported output height"

    # ---- glue: one fused XLA pass (NCHW->NHWC, bf16 cast, zero pad) --------
    x_nhwc = jnp.pad(
        jnp.transpose(x_nchw, (0, 2, 3, 1)).astype(compute_dtype),
        ((0, 0), (padding, padding), (padding, padding), (0, 0)))

    # Taps as (9, Cin, Coutp) with k = dx*3 + dy (matches the kernel); Cout is
    # zero-padded so the weight / accumulator lanes are dense.  Resident block.
    w9 = jnp.transpose(weight_oihw, (3, 2, 1, 0)).reshape(
        KH * KW, Cin, Cout).astype(compute_dtype)
    if Coutp != Cout:
        w9 = jnp.pad(w9, ((0, 0), (0, 0), (0, Coutp - Cout)))
    b = jnp.zeros((1, Coutp), jnp.float32)
    if bias is not None:
        b = b.at[0, :Cout].set(jnp.asarray(bias, jnp.float32).reshape(Cout))

    HW = H_out * W_out
    grid = (N, H_out // TH)
    flops = 2 * N * H_out * W_out * 9 * Cin * Cout
    bytes_accessed = (N * Hp * Wp * Cin * 2          # bf16 input
                      + 9 * Cin * Coutp * 2          # bf16 weights
                      + N * Cout * HW * 4)           # f32 NCHW output

    # TODO(synk): for very large layers add a Cout grid axis (tile the matmul
    # N dimension) so weights + output slab stay within the v7x VMEM budget.
    y_flat = pl.pallas_call(
        functools.partial(_conv3x3_bias_relu_kernel,
                          apply_relu=relu, cout=Cout),
        out_shape=jax.ShapeDtypeStruct((N, Cout, HW), jnp.float32),
        grid_spec=pltpu.PrefetchScalarGridSpec(
            num_scalar_prefetch=0,
            grid=grid,
            in_specs=[
                # main TH-row slab of the padded image
                pl.BlockSpec((1, TH, Wp, Cin), lambda n, h: (n, h, 0, 0)),
                # 2-row bottom halo of the same padded image
                pl.BlockSpec((1, 2, Wp, Cin),
                             lambda n, h: (n, (h + 1) * (TH // 2), 0, 0)),
                # taps + bias: constant index maps -> resident in VMEM
                pl.BlockSpec((9, Cin, Coutp), lambda n, h: (0, 0, 0)),
                pl.BlockSpec((1, Coutp), lambda n, h: (0, 0)),
            ],
            out_specs=pl.BlockSpec((1, Cout, TH * W_out),
                                   lambda n, h: (n, 0, h)),
        ),
        compiler_params=pltpu.CompilerParams(
            dimension_semantics=("parallel", "parallel"),
            vmem_limit_bytes=vmem_limit),
        cost_estimate=pl.CostEstimate(flops=flops, transcendentals=0,
                                      bytes_accessed=bytes_accessed),
    )(x_nhwc, x_nhwc, w9, b)

    # Free reshape (row-major contiguous): (N, Cout, H*W) -> (N, Cout, H, W).
    return y_flat.reshape(N, Cout, H_out, W_out)


if __name__ == "__main__":
    key = jax.random.PRNGKey(0)
    kx, kw = jax.random.split(key)

    N, Cin, H, W = 2, 4, 16, 16
    Cout = 8

    x = jax.random.normal(kx, (N, Cin, H, W), jnp.float32)
    w = jax.random.normal(kw, (Cout, Cin, 3, 3), jnp.float32) * 0.1
    # Round inputs to bf16 so the bf16-MXU kernel and the f32 XLA reference
    # see bit-identical operands (tight correctness check).
    x = x.astype(jnp.bfloat16).astype(jnp.float32)
    w = w.astype(jnp.bfloat16).astype(jnp.float32)

    fwd = jax.jit(lambda xx, ww: basic_conv_forward(xx, ww, padding=1, relu=True))
    out = jax.block_until_ready(fwd(x, w))
    assert out.shape == (N, Cout, H, W), out.shape

    ref = jax.lax.conv_general_dilated(
        x, w, window_strides=(1, 1), padding=((1, 1), (1, 1)),
        dimension_numbers=("NCHW", "OIHW", "NCHW"))
    ref = jnp.maximum(ref, 0.0)
    max_err = float(jnp.max(jnp.abs(out - ref)))
    assert jnp.allclose(out, ref, atol=1e-3, rtol=1e-3), max_err

    print("KERNEL_OK")
</pallas_src>

<mosaic_0001>
module attributes {stable_mosaic.version = 11 : i64} {
  func.func @_conv3x3_bias_relu_kernel(%arg0: i32, %arg1: i32, %arg2: memref<1x16x18x4xbf16, #tpu.memory_space<vmem>>, %arg3: memref<1x2x18x4xbf16, #tpu.memory_space<vmem>>, %arg4: memref<9x4x128xbf16, #tpu.memory_space<vmem>>, %arg5: memref<1x128xf32, #tpu.memory_space<vmem>>, %arg6: memref<1x8x256xf32, #tpu.memory_space<vmem>>) attributes {dimension_semantics = [#tpu.dimension_semantics<parallel>, #tpu.dimension_semantics<parallel>], iteration_bounds = array<i64: 2, 1>, scalar_prefetch = 0 : i64, scratch_operands = 0 : i64, tpu.core_type = #tpu.core_type<tc>, window_params = [{transform_indices = @transform_0, window_bounds = array<i64: 1, 16, 18, 4>}, {transform_indices = @transform_1, window_bounds = array<i64: 1, 2, 18, 4>}, {pipeline_mode = #tpu.pipeline_mode<synchronous>, transform_indices = @transform_2, window_bounds = array<i64: 9, 4, 128>}, {pipeline_mode = #tpu.pipeline_mode<synchronous>, transform_indices = @transform_3, window_bounds = array<i64: 1, 128>}, {transform_indices = @transform_4, window_bounds = array<i64: 1, 8, 256>}]} {
    %c0 = arith.constant 0 : index
    %c0_0 = arith.constant 0 : index
    %c0_1 = arith.constant 0 : index
    %c0_2 = arith.constant 0 : index
    %0 = vector.load %arg2[%c0, %c0_0, %c0_1, %c0_2] : memref<1x16x18x4xbf16, #tpu.memory_space<vmem>>, vector<1x16x18x4xbf16>
    %1 = vector.shape_cast %0 : vector<1x16x18x4xbf16> to vector<16x18x4xbf16>
    %c0_3 = arith.constant 0 : index
    %c0_4 = arith.constant 0 : index
    %c0_5 = arith.constant 0 : index
    %c0_6 = arith.constant 0 : index
    %2 = vector.load %arg3[%c0_3, %c0_4, %c0_5, %c0_6] : memref<1x2x18x4xbf16, #tpu.memory_space<vmem>>, vector<1x2x18x4xbf16>
    %3 = vector.shape_cast %2 : vector<1x2x18x4xbf16> to vector<2x18x4xbf16>
    %4 = tpu.concatenate %1, %3 in 0 : vector<16x18x4xbf16>, vector<2x18x4xbf16> -> vector<18x18x4xbf16>
    %cst = arith.constant 0.000000e+00 : f32
    %5 = vector.broadcast %cst : f32 to vector<256x128xf32>
    %6 = vector.extract_strided_slice %4 {offsets = [0, 0, 0], sizes = [18, 16, 4], strides = [1, 1, 1]} : vector<18x18x4xbf16> to vector<18x16x4xbf16>
    %7 = vector.extract_strided_slice %6 {offsets = [0, 0, 0], sizes = [16, 16, 4], strides = [1, 1, 1]} : vector<18x16x4xbf16> to vector<16x16x4xbf16>
    %8 = vector.shape_cast %7 : vector<16x16x4xbf16> to vector<256x4xbf16>
    %c0_7 = arith.constant 0 : index
    %c0_8 = arith.constant 0 : index
    %c0_9 = arith.constant 0 : index
    %9 = vector.load %arg4[%c0_7, %c0_8, %c0_9] : memref<9x4x128xbf16, #tpu.memory_space<vmem>>, vector<1x4x128xbf16>
    %10 = vector.shape_cast %9 : vector<1x4x128xbf16> to vector<4x128xbf16>
    %cst_10 = arith.constant dense<0.000000e+00> : vector<256x128xf32>
    %11 = tpu.matmul %8, %10, %cst_10 {dimension_numbers = #tpu.dot_dimension_numbers<[1], [0], [0], [1], [0, 0, 1, 1], [], []>} : vector<256x4xbf16>, vector<4x128xbf16>, vector<256x128xf32> -> vector<256x128xf32>
    %12 = arith.addf %5, %11 : vector<256x128xf32>
    %13 = vector.extract_strided_slice %6 {offsets = [1, 0, 0], sizes = [16, 16, 4], strides = [1, 1, 1]} : vector<18x16x4xbf16> to vector<16x16x4xbf16>
    %14 = vector.shape_cast %13 : vector<16x16x4xbf16> to vector<256x4xbf16>
    %c1 = arith.constant 1 : index
    %c0_11 = arith.constant 0 : index
    %c0_12 = arith.constant 0 : index
    %15 = vector.load %arg4[%c1, %c0_11, %c0_12] : memref<9x4x128xbf16, #tpu.memory_space<vmem>>, vector<1x4x128xbf16>
    %16 = vector.shape_cast %15 : vector<1x4x128xbf16> to vector<4x128xbf16>
    %cst_13 = arith.constant dense<0.000000e+00> : vector<256x128xf32>
    %17 = tpu.matmul %14, %16, %cst_13 {dimension_numbers = #tpu.dot_dimension_numbers<[1], [0], [0], [1], [0, 0, 1, 1], [], []>} : vector<256x4xbf16>, vector<4x128xbf16>, vector<256x128xf32> -> vector<256x128xf32>
    %18 = arith.addf %12, %17 : vector<256x128xf32>
    %19 = vector.extract_strided_slice %6 {offsets = [2, 0, 0], sizes = [16, 16, 4], strides = [1, 1, 1]} : vector<18x16x4xbf16> to vector<16x16x4xbf16>
    %20 = vector.shape_cast %19 : vector<16x16x4xbf16> to vector<256x4xbf16>
    %c2 = arith.constant 2 : index
    %c0_14 = arith.constant 0 : index
    %c0_15 = arith.constant 0 : index
    %21 = vector.load %arg4[%c2, %c0_14, %c0_15] : memref<9x4x128xbf16, #tpu.memory_space<vmem>>, vector<1x4x128xbf16>
    %22 = vector.shape_cast %21 : vector<1x4x128xbf16> to vector<4x128xbf16>
    %cst_16 = arith.constant dense<0.000000e+00> : vector<256x128xf32>
    %23 = tpu.matmul %20, %22, %cst_16 {dimension_numbers = #tpu.dot_dimension_numbers<[1], [0], [0], [1], [0, 0, 1, 1], [], []>} : vector<256x4xbf16>, vector<4x128xbf16>, vector<256x128xf32> -> vector<256x128xf32>
    %24 = arith.addf %18, %23 : vector<256x128xf32>
    %25 = vector.extract_strided_slice %4 {offsets = [0, 1, 0], sizes = [18, 16, 4], strides = [1, 1, 1]} : vector<18x18x4xbf16> to vector<18x16x4xbf16>
    %26 = vector.extract_strided_slice %25 {offsets = [0, 0, 0], sizes = [16, 16, 4], strides = [1, 1, 1]} : vector<18x16x4xbf16> to vector<16x16x4xbf16>
    %27 = vector.shape_cast %26 : vector<16x16x4xbf16> to vector<256x4xbf16>
    %c3 = arith.constant 3 : index
    %c0_17 = arith.constant 0 : index
    %c0_18 = arith.constant 0 : index
    %28 = vector.load %arg4[%c3, %c0_17, %c0_18] : memref<9x4x128xbf16, #tpu.memory_space<vmem>>, vector<1x4x128xbf16>
    %29 = vector.shape_cast %28 : vector<1x4x128xbf16> to vector<4x128xbf16>
    %cst_19 = arith.constant dense<0.000000e+00> : vector<256x128xf32>
    %30 = tpu.matmul %27, %29, %cst_19 {dimension_numbers = #tpu.dot_dimension_numbers<[1], [0], [0], [1], [0, 0, 1, 1], [], []>} : vector<256x4xbf16>, vector<4x128xbf16>, vector<256x128xf32> -> vector<256x128xf32>
    %31 = arith.addf %24, %30 : vector<256x128xf32>
    %32 = vector.extract_strided_slice %25 {offsets = [1, 0, 0], sizes = [16, 16, 4], strides = [1, 1, 1]} : vector<18x16x4xbf16> to vector<16x16x4xbf16>
    %33 = vector.shape_cast %32 : vector<16x16x4xbf16> to vector<256x4xbf16>
    %c4 = arith.constant 4 : index
    %c0_20 = arith.constant 0 : index
    %c0_21 = arith.constant 0 : index
    %34 = vector.load %arg4[%c4, %c0_20, %c0_21] : memref<9x4x128xbf16, #tpu.memory_space<vmem>>, vector<1x4x128xbf16>
    %35 = vector.shape_cast %34 : vector<1x4x128xbf16> to vector<4x128xbf16>
    %cst_22 = arith.constant dense<0.000000e+00> : vector<256x128xf32>
    %36 = tpu.matmul %33, %35, %cst_22 {dimension_numbers = #tpu.dot_dimension_numbers<[1], [0], [0], [1], [0, 0, 1, 1], [], []>} : vector<256x4xbf16>, vector<4x128xbf16>, vector<256x128xf32> -> vector<256x128xf32>
    %37 = arith.addf %31, %36 : vector<256x128xf32>
    %38 = vector.extract_strided_slice %25 {offsets = [2, 0, 0], sizes = [16, 16, 4], strides = [1, 1, 1]} : vector<18x16x4xbf16> to vector<16x16x4xbf16>
    %39 = vector.shape_cast %38 : vector<16x16x4xbf16> to vector<256x4xbf16>
    %c5 = arith.constant 5 : index
    %c0_23 = arith.constant 0 : index
    %c0_24 = arith.constant 0 : index
    %40 = vector.load %arg4[%c5, %c0_23, %c0_24] : memref<9x4x128xbf16, #tpu.memory_space<vmem>>, vector<1x4x128xbf16>
    %41 = vector.shape_cast %40 : vector<1x4x128xbf16> to vector<4x128xbf16>
    %cst_25 = arith.constant dense<0.000000e+00> : vector<256x128xf32>
    %42 = tpu.matmul %39, %41, %cst_25 {dimension_numbers = #tpu.dot_dimension_numbers<[1], [0], [0], [1], [0, 0, 1, 1], [], []>} : vector<256x4xbf16>, vector<4x128xbf16>, vector<256x128xf32> -> vector<256x128xf32>
    %43 = arith.addf %37, %42 : vector<256x128xf32>
    %44 = vector.extract_strided_slice %4 {offsets = [0, 2, 0], sizes = [18, 16, 4], strides = [1, 1, 1]} : vector<18x18x4xbf16> to vector<18x16x4xbf16>
    %45 = vector.extract_strided_slice %44 {offsets = [0, 0, 0], sizes = [16, 16, 4], strides = [1, 1, 1]} : vector<18x16x4xbf16> to vector<16x16x4xbf16>
    %46 = vector.shape_cast %45 : vector<16x16x4xbf16> to vector<256x4xbf16>
    %c6 = arith.constant 6 : index
    %c0_26 = arith.constant 0 : index
    %c0_27 = arith.constant 0 : index
    %47 = vector.load %arg4[%c6, %c0_26, %c0_27] : memref<9x4x128xbf16, #tpu.memory_space<vmem>>, vector<1x4x128xbf16>
    %48 = vector.shape_cast %47 : vector<1x4x128xbf16> to vector<4x128xbf16>
    %cst_28 = arith.constant dense<0.000000e+00> : vector<256x128xf32>
    %49 = tpu.matmul %46, %48, %cst_28 {dimension_numbers = #tpu.dot_dimension_numbers<[1], [0], [0], [1], [0, 0, 1, 1], [], []>} : vector<256x4xbf16>, vector<4x128xbf16>, vector<256x128xf32> -> vector<256x128xf32>
    %50 = arith.addf %43, %49 : vector<256x128xf32>
    %51 = vector.extract_strided_slice %44 {offsets = [1, 0, 0], sizes = [16, 16, 4], strides = [1, 1, 1]} : vector<18x16x4xbf16> to vector<16x16x4xbf16>
    %52 = vector.shape_cast %51 : vector<16x16x4xbf16> to vector<256x4xbf16>
    %c7 = arith.constant 7 : index
    %c0_29 = arith.constant 0 : index
    %c0_30 = arith.constant 0 : index
    %53 = vector.load %arg4[%c7, %c0_29, %c0_30] : memref<9x4x128xbf16, #tpu.memory_space<vmem>>, vector<1x4x128xbf16>
    %54 = vector.shape_cast %53 : vector<1x4x128xbf16> to vector<4x128xbf16>
    %cst_31 = arith.constant dense<0.000000e+00> : vector<256x128xf32>
    %55 = tpu.matmul %52, %54, %cst_31 {dimension_numbers = #tpu.dot_dimension_numbers<[1], [0], [0], [1], [0, 0, 1, 1], [], []>} : vector<256x4xbf16>, vector<4x128xbf16>, vector<256x128xf32> -> vector<256x128xf32>
    %56 = arith.addf %50, %55 : vector<256x128xf32>
    %57 = vector.extract_strided_slice %44 {offsets = [2, 0, 0], sizes = [16, 16, 4], strides = [1, 1, 1]} : vector<18x16x4xbf16> to vector<16x16x4xbf16>
    %58 = vector.shape_cast %57 : vector<16x16x4xbf16> to vector<256x4xbf16>
    %c8 = arith.constant 8 : index
    %c0_32 = arith.constant 0 : index
    %c0_33 = arith.constant 0 : index
    %59 = vector.load %arg4[%c8, %c0_32, %c0_33] : memref<9x4x128xbf16, #tpu.memory_space<vmem>>, vector<1x4x128xbf16>
    %60 = vector.shape_cast %59 : vector<1x4x128xbf16> to vector<4x128xbf16>
    %cst_34 = arith.constant dense<0.000000e+00> : vector<256x128xf32>
    %61 = tpu.matmul %58, %60, %cst_34 {dimension_numbers = #tpu.dot_dimension_numbers<[1], [0], [0], [1], [0, 0, 1, 1], [], []>} : vector<256x4xbf16>, vector<4x128xbf16>, vector<256x128xf32> -> vector<256x128xf32>
    %62 = arith.addf %56, %61 : vector<256x128xf32>
    %c0_35 = arith.constant 0 : index
    %c0_36 = arith.constant 0 : index
    %63 = vector.load %arg5[%c0_35, %c0_36] : memref<1x128xf32, #tpu.memory_space<vmem>>, vector<1x128xf32>
    %64 = vector.broadcast %63 : vector<1x128xf32> to vector<256x128xf32>
    %65 = arith.addf %62, %64 : vector<256x128xf32>
    %cst_37 = arith.constant 0.000000e+00 : f32
    %66 = vector.broadcast %cst_37 : f32 to vector<256x128xf32>
    %67 = arith.maximumf %65, %66 : vector<256x128xf32>
    %68 = tpu.transpose %67, [1, 0] : vector<256x128xf32> -> vector<128x256xf32>
    %69 = vector.extract_strided_slice %68 {offsets = [0, 0], sizes = [8, 256], strides = [1, 1]} : vector<128x256xf32> to vector<8x256xf32>
    %70 = vector.shape_cast %69 : vector<8x256xf32> to vector<1x8x256xf32>
    %c0_38 = arith.constant 0 : index
    %c0_39 = arith.constant 0 : index
    %c0_40 = arith.constant 0 : index
    %71 = vector.load %arg6[%c0_38, %c0_39, %c0_40] : memref<1x8x256xf32, #tpu.memory_space<vmem>>, vector<1x8x256xf32>
    tpu.vector_store %arg6[%c0_38, %c0_39, %c0_40], %70 {strides = array<i32>} : memref<1x8x256xf32, #tpu.memory_space<vmem>>, vector<1x8x256xf32>,
    return
  }
  func.func @transform_0(%arg0: i32, %arg1: i32) -> (i32, i32, i32, i32) {
    %c0_i32 = arith.constant 0 : i32
    %c0_i32_0 = arith.constant 0 : i32
    %c0_i32_1 = arith.constant 0 : i32
    return %arg0, %arg1, %c0_i32, %c0_i32_0 : i32, i32, i32, i32
  }
  func.func @transform_1(%arg0: i32, %arg1: i32) -> (i32, i32, i32, i32) {
    %c1_i32 = arith.constant 1 : i32
    %0 = arith.addi %arg1, %c1_i32 : i32
    %c8_i32 = arith.constant 8 : i32
    %1 = arith.muli %0, %c8_i32 : i32
    %c0_i32 = arith.constant 0 : i32
    %c0_i32_0 = arith.constant 0 : i32
    %c0_i32_1 = arith.constant 0 : i32
    return %arg0, %1, %c0_i32, %c0_i32_0 : i32, i32, i32, i32
  }
  func.func @transform_2(%arg0: i32, %arg1: i32) -> (i32, i32, i32) {
    %c0_i32 = arith.constant 0 : i32
    %c0_i32_0 = arith.constant 0 : i32
    %c0_i32_1 = arith.constant 0 : i32
    %c0_i32_2 = arith.constant 0 : i32
    return %c0_i32, %c0_i32_0, %c0_i32_1 : i32, i32, i32
  }
  func.func @transform_3(%arg0: i32, %arg1: i32) -> (i32, i32) {
    %c0_i32 = arith.constant 0 : i32
    %c0_i32_0 = arith.constant 0 : i32
    %c0_i32_1 = arith.constant 0 : i32
    return %c0_i32, %c0_i32_0 : i32, i32
  }
  func.func @transform_4(%arg0: i32, %arg1: i32) -> (i32, i32, i32) {
    %c0_i32 = arith.constant 0 : i32
    %c0_i32_0 = arith.constant 0 : i32
    return %arg0, %c0_i32, %arg1 : i32, i32, i32
  }
}

</mosaic_0001>

<llo_original>
// kernel: _lambda_.1
$region0: #{_lambda_.1}
  #allocation0 [shape = 'u32[]', space=smem, size = 0x4, offset = 0x4, fixed_abs, tag = 'smem constant byte address 0x4 - core index']
  #allocation1 [shape = 'u32[144,128]{1,0:T(1,128)}', space=vmem, size = 0x12000, scoped, tag = 'internal scratch']
  %s0 = inlined_call_operand.vmem [shape: bf16[2,18,18,4], index: 0, kind: input, shape index: {}, may-alias: {0,1}]
  %s1 = inlined_call_operand.vmem [shape: bf16[2,18,18,4], index: 1, kind: input, shape index: {}, may-alias: {0,1}]
  %s2 = inlined_call_operand.vmem [shape: bf16[9,4,128], index: 2, kind: input, shape index: {}]
  %s3 = inlined_call_operand.vmem [shape: f32[1,128], index: 3, kind: input, shape index: {}]
  %s4 = inlined_call_operand.vmem [shape: f32[2,8,256], index: 4, kind: output, shape index: {}]
  %s5 = sld [smem:[#allocation0]]
  $region49: #{_lambda_.1} parent=0
    _
  %s7 = ssub.s32 1, %s5
  %s8 = scalar_select 0, %s7, %s5
  loop: start=0, step=1, limit=4
  $region2: #{_lambda_.1} parent=0 // loop_pre_header
    _
  $region3: #{_lambda_.1} parent=0 // loop_header
    %s10 = sphi 0, %s14
    %p11 = scmp.ge.s32.totalorder %s10, 4
    %s17 = sphi 0, %s29
    %s18 = sphi 0, %s25
    %s19 = sphi 0, %s17
    %s20 = sphi 0, %s18
    %s21 = sphi 0, %s19
    %s22 = sphi 0, %s20
    %s34 = sphi 0, %s36
    %s37 = sphi 0, %s34
    %s38 = sphi 0, %s37
    %s54 = sphi 0, %s38
    %s66 = sphi 0, %s68
    %s69 = sphi 0, %s66
    %s70 = sphi 0, %s69
    %s86 = sphi 0, %s70
    %s90 = sphi 0, %s90
    %s92 = sphi 0, %s90
    %s93 = sphi 0, %s92
    %s107 = sphi 0, %s93
    %s111 = sphi 0, %s111
    %s113 = sphi 0, %s111
    %s114 = sphi 0, %s113
    %s128 = sphi 0, %s114
    %s136 = sphi 0, %s138
    %s139 = sphi 0, %s136
    %s140 = sphi 0, %s139
    %s156 = sphi 0, %s140
  $region4: #{_lambda_.1} parent=0 // loop_header_branch
    %13 = sbr.rel (%p11) target = $region8
  $region5: #{_lambda_.1} parent=0 // loop_body
    %s15 = ssub.s32 %s10, 1
    %s16 = ssub.s32 %s10, 2
    %s23 = sadd.s32 1, %s18
    %p24 = scmp.ge.s32.totalorder %s23, 1
    %s25 = scalar_select %p24, 0, %s23
    %s26 = sadd.s32 1, %s17
    %s27 = scalar_select %p24, %s26, %s17
    %p28 = scmp.ge.s32.totalorder %s27, 2
    %s29 = scalar_select %p28, 0, %s27
    %s30 = ssub.s32 %s17, %s29
    %s31 = ssub.s32 %s18, %s25
    %s32 = sor.u32 %s30, %s31
    %p33 = scmp.eq.s32.totalorder %s32, 0
    %s35 = sadd.s32 %s34, 1
    %s36 = scalar_select %p33, %s34, %s35
    %p39 = pneg %p33
    %p40 = scmp.eq.s32.totalorder %s10, 1
    %p41 = por %p39, %p40
    %p42 = scmp.ne.s32.totalorder %s34, %s37
    %p43 = scmp.eq.s32.totalorder %s10, 0
    %p44 = por %p42, %p43
    %p45 = scmp.ne.s32.totalorder %s34, %s37
    %p46 = scmp.eq.s32.totalorder %s15, 1
    %p47 = por %p45, %p46
    %p48 = scmp.ne.s32.totalorder %s37, %s38
    %p49 = scmp.eq.s32.totalorder %s15, 0
    %p50 = por %p48, %p49
    %p51 = scmp.ne.s32.totalorder %s37, %s38
    %p52 = scmp.eq.s32.totalorder %s16, 1
    %p53 = por %p51, %p52
    %p55 = scmp.ne.s32.totalorder %s38, %s54
    %p56 = scmp.eq.s32.totalorder %s16, 0
    %p57 = por %p55, %p56
    %s58 = sadd.s32 %s18, 1
    %s59 = smul.u32 %s58, 8
    %s60 = sadd.s32 %s25, 1
    %s61 = smul.u32 %s60, 8
    %s62 = ssub.s32 %s17, %s29
    %s63 = ssub.s32 %s59, %s61
    %s64 = sor.u32 %s62, %s63
    %p65 = scmp.eq.s32.totalorder %s64, 0
    %s67 = sadd.s32 %s66, 1
    %s68 = scalar_select %p65, %s66, %s67
    %p71 = pneg %p65
    %p72 = scmp.eq.s32.totalorder %s10, 1
    %p73 = por %p71, %p72
    %p74 = scmp.ne.s32.totalorder %s66, %s69
    %p75 = scmp.eq.s32.totalorder %s10, 0
    %p76 = por %p74, %p75
    %p77 = scmp.ne.s32.totalorder %s66, %s69
    %p78 = scmp.eq.s32.totalorder %s15, 1
    %p79 = por %p77, %p78
    %p80 = scmp.ne.s32.totalorder %s69, %s70
    %p81 = scmp.eq.s32.totalorder %s15, 0
    %p82 = por %p80, %p81
    %p83 = scmp.ne.s32.totalorder %s69, %s70
    %p84 = scmp.eq.s32.totalorder %s16, 1
    %p85 = por %p83, %p84
    %p87 = scmp.ne.s32.totalorder %s70, %s86
    %p88 = scmp.eq.s32.totalorder %s16, 0
    %p89 = por %p87, %p88
    %s91 = sadd.s32 %s90, 1
    %p94 = scmp.eq.s32.totalorder %s10, 1
    %p95 = scmp.ne.s32.totalorder %s90, %s92
    %p96 = scmp.eq.s32.totalorder %s10, 0
    %p97 = por %p95, %p96
    %p98 = scmp.ne.s32.totalorder %s90, %s92
    %p99 = scmp.eq.s32.totalorder %s15, 1
    %p100 = por %p98, %p99
    %p101 = scmp.ne.s32.totalorder %s92, %s93
    %p102 = scmp.eq.s32.totalorder %s15, 0
    %p103 = por %p101, %p102
    %p104 = scmp.ne.s32.totalorder %s92, %s93
    %p105 = scmp.eq.s32.totalorder %s16, 1
    %p106 = por %p104, %p105
    %p108 = scmp.ne.s32.totalorder %s93, %s107
    %p109 = scmp.eq.s32.totalorder %s16, 0
    %p110 = por %p108, %p109
    %s112 = sadd.s32 %s111, 1
    %p115 = scmp.eq.s32.totalorder %s10, 1
    %p116 = scmp.ne.s32.totalorder %s111, %s113
    %p117 = scmp.eq.s32.totalorder %s10, 0
    %p118 = por %p116, %p117
    %p119 = scmp.ne.s32.totalorder %s111, %s113
    %p120 = scmp.eq.s32.totalorder %s15, 1
    %p121 = por %p119, %p120
    %p122 = scmp.ne.s32.totalorder %s113, %s114
    %p123 = scmp.eq.s32.totalorder %s15, 0
    %p124 = por %p122, %p123
    %p125 = scmp.ne.s32.totalorder %s113, %s114
    %p126 = scmp.eq.s32.totalorder %s16, 1
    %p127 = por %p125, %p126
    %p129 = scmp.ne.s32.totalorder %s114, %s128
    %p130 = scmp.eq.s32.totalorder %s16, 0
    %p131 = por %p129, %p130
    %s132 = ssub.s32 %s17, %s29
    %s133 = ssub.s32 %s18, %s25
    %s134 = sor.u32 %s132, %s133
    %p135 = scmp.eq.s32.totalorder %s134, 0
    %s137 = sadd.s32 %s136, 1
    %s138 = scalar_select %p135, %s136, %s137
    %p141 = pneg %p135
    %p142 = scmp.eq.s32.totalorder %s10, 1
    %p143 = por %p141, %p142
    %p144 = scmp.ne.s32.totalorder %s136, %s139
    %p145 = scmp.eq.s32.totalorder %s10, 0
    %p146 = por %p144, %p145
    %p147 = scmp.ne.s32.totalorder %s136, %s139
    %p148 = scmp.eq.s32.totalorder %s15, 1
    %p149 = por %p147, %p148
    %p150 = scmp.ne.s32.totalorder %s139, %s140
    %p151 = scmp.eq.s32.totalorder %s15, 0
    %p152 = por %p150, %p151
    %p153 = scmp.ne.s32.totalorder %s139, %s140
    %p154 = scmp.eq.s32.totalorder %s16, 1
    %p155 = por %p153, %p154
    %p157 = scmp.ne.s32.totalorder %s140, %s156
    %p158 = scmp.eq.s32.totalorder %s16, 0
    %p159 = por %p157, %p158
    %p160 = scmp.le.s32.totalorder 1, %s10
    %p161 = scmp.lt.s32.totalorder %s10, 3
    %p162 = pnand %p160, %p161
    %p163 = pneg %p162
    // Predicated region
    $region9: #{_lambda_.1} parent=5 // pred_check
      _
    $region10: #{_lambda_.1} parent=5 // pred_check_branch
      %165 = sbr.rel (%p162) target = $region12
    $region11: #{_lambda_.1} parent=5 // pred_region
      %s166 = ssub.s32 %s10, 1
      // Predicated region
      $region13: #{_lambda_.1} parent=11 // pred_check
        %p167 = pneg %p103
      $region14: #{_lambda_.1} parent=11 // pred_check_branch
        %169 = sbr.rel (%p167) target = $region16
      $region15: #{_lambda_.1} parent=11 // pred_region
        _
      $region16: #{_lambda_.1} parent=11 // pred_fallthru
        _
      // Predicated region
      $region17: #{_lambda_.1} parent=11 // pred_check
        %p170 = pneg %p124
      $region18: #{_lambda_.1} parent=11 // pred_check_branch
        %172 = sbr.rel (%p170) target = $region20
      $region19: #{_lambda_.1} parent=11 // pred_region
        _
      $region20: #{_lambda_.1} parent=11 // pred_fallthru
        _
    $region12: #{_lambda_.1} parent=5 // pred_fallthru
      _
    %p173 = scmp.lt.s32.totalorder %s10, 2
    // Predicated region
    $region21: #{_lambda_.1} parent=5 // pred_check
      %p174 = pneg %p173
    $region22: #{_lambda_.1} parent=5 // pred_check_branch
      %176 = sbr.rel (%p174) target = $region24
    $region23: #{_lambda_.1} parent=5 // pred_region
      // Predicated region
      $region25: #{_lambda_.1} parent=23 // pred_check
        %p177 = pneg %p44
      $region26: #{_lambda_.1} parent=23 // pred_check_branch
        %179 = sbr.rel (%p177) target = $region28
      $region27: #{_lambda_.1} parent=23 // pred_region
        %s180 = smul.u32 16, %s18
        %s181 = ssub.s32 18, %s180
        %p182 = scmp.lt.s32.totalorder %s181, 16
        %s183 = scalar_select %p182, %s181, 16
        %s184 = smul.u32 64, %s183
        %s185 = smul.u32 %s184, 3
        %p186 = scmp.lt.s32.totalorder %s17, 1
        %s187 = scalar_select %p186, %s17, 1
        %p188 = scmp.lt.s32.totalorder %s180, 17
        %s189 = scalar_select %p188, %s180, 17
        %s190 = smul.addr %s189, 3
        %s191 = smul.addr %s187, 54
        %s192 = sadd.s32 %s190, %s191
        %s193 = smul.addr %s192, 4
        %s194 = scalar_lea.vmem %s0, %s193
        %s195 = smul.u32 16, %s18
        %s196 = ssub.s32 18, %s195
        %p197 = scmp.lt.s32.totalorder %s196, 16
        %s198 = scalar_select %p197, %s196, 16
        %s199 = smul.u32 64, %s198
        %s200 = smul.u32 %s199, 3
      $region28: #{_lambda_.1} parent=23 // pred_fallthru
        _
      // Predicated region
      $region29: #{_lambda_.1} parent=23 // pred_check
        %p201 = pneg %p76
      $region30: #{_lambda_.1} parent=23 // pred_check_branch
        %203 = sbr.rel (%p201) target = $region32
      $region31: #{_lambda_.1} parent=23 // pred_region
        %s204 = sadd.s32 %s18, 1
        %s205 = smul.u32 %s204, 8
        %s206 = smul.u32 2, %s205
        %p207 = scmp.lt.s32.totalorder %s17, 1
        %s208 = scalar_select %p207, %s17, 1
        %p209 = scmp.lt.s32.totalorder %s206, 17
        %s210 = scalar_select %p209, %s206, 17
        %s211 = smul.addr %s210, 3
        %s212 = smul.addr %s208, 54
        %s213 = sadd.s32 %s211, %s212
        %s214 = smul.addr %s213, 4
        %s215 = scalar_lea.vmem %s1, %s214
        %s216 = sadd.s32 %s18, 1
        %s217 = smul.u32 %s216, 8
        %s218 = smul.u32 2, %s217
      $region32: #{_lambda_.1} parent=23 // pred_fallthru
        _
    $region24: #{_lambda_.1} parent=5 // pred_fallthru
      _
    %p219 = scmp.le.s32.totalorder 1, %s10
    %p220 = scmp.lt.s32.totalorder %s10, 3
    %p221 = pnand %p219, %p220
    %p222 = pneg %p221
    // Predicated region
    $region33: #{_lambda_.1} parent=5 // pred_check
      _
    $region34: #{_lambda_.1} parent=5 // pred_check_branch
      %224 = sbr.rel (%p221) target = $region36
    $region35: #{_lambda_.1} parent=5 // pred_region
      %s225 = ssub.s32 %s10, 1
      %s226 = smul.u32 16, %s20
      %s227 = ssub.s32 18, %s226
      %p228 = scmp.lt.s32.totalorder %s227, 16
      %s229 = scalar_select %p228, %s227, 16
      %s230 = smul.u32 64, %s229
      %s231 = smul.u32 %s230, 3
      %p232 = scmp.lt.s32.totalorder %s19, 1
      %s233 = scalar_select %p232, %s19, 1
      %p234 = scmp.lt.s32.totalorder %s226, 17
      %s235 = scalar_select %p234, %s226, 17
      %s236 = smul.addr %s235, 3
      %s237 = smul.addr %s233, 54
      %s238 = sadd.s32 %s236, %s237
      %s239 = smul.addr %s238, 4
      %s240 = scalar_lea.vmem %s0, %s239
      %p241 = pneg %p50
      %p242 = pneg %p47
      %s243 = sadd.s32 %s20, 1
      %s244 = smul.u32 %s243, 8
      %s245 = smul.u32 2, %s244
      %p246 = scmp.lt.s32.totalorder %s19, 1
      %s247 = scalar_select %p246, %s19, 1
      %p248 = scmp.lt.s32.totalorder %s245, 17
      %s249 = scalar_select %p248, %s245, 17
      %s250 = smul.addr %s249, 3
      %s251 = smul.addr %s247, 54
      %s252 = sadd.s32 %s250, %s251
      %s253 = smul.addr %s252, 4
      %s254 = scalar_lea.vmem %s1, %s253
      %p255 = pneg %p82
      %p256 = pneg %p79
      %p257 = pneg %p103
      %p258 = pneg %p100
      %p259 = pneg %p124
      %p260 = pneg %p121
      %p261 = pneg %p152
      %p262 = pneg %p149
      %s263 = smul.u32 2, %s20
      %p264 = scmp.lt.s32.totalorder %s19, 1
      %s265 = scalar_select %p264, %s19, 1
      %p266 = scmp.lt.s32.totalorder %s263, 1
      %s267 = scalar_select %p266, %s263, 1
      %s268 = smul.addr %s265, 2
      %s269 = sadd.s32 %s267, %s268
      %s270 = smul.addr %s269, 8
      %s271 = scalar_lea.vmem %s4, %s270
      %s272 = smul.u32 16, %s20
      %s273 = ssub.s32 18, %s272
      %p274 = scmp.lt.s32.totalorder %s273, 16
      %s275 = scalar_select %p274, %s273, 16
      %s276 = smul.u32 64, %s275
      %s277 = smul.u32 %s276, 3
      %p278 = scmp.lt.s32.totalorder %s19, 1
      %s279 = scalar_select %p278, %s19, 1
      %p280 = scmp.lt.s32.totalorder %s272, 17
      %s281 = scalar_select %p280, %s272, 17
      %s282 = smul.addr %s281, 3
      %s283 = smul.addr %s279, 54
      %s284 = sadd.s32 %s282, %s283
      %s285 = smul.addr %s284, 4
      %s286 = scalar_lea.vmem %s0, %s285
      %s287 = smul.u32 16, %s20
      %s288 = ssub.s32 18, %s287
      %p289 = scmp.lt.s32.totalorder %s288, 16
      %s290 = scalar_select %p289, %s288, 16
      %s291 = smul.u32 64, %s290
      %s292 = smul.u32 %s291, 3
      %s293 = sadd.s32 %s20, 1
      %s294 = smul.u32 %s293, 8
      %s295 = smul.u32 2, %s294
      %p296 = scmp.lt.s32.totalorder %s19, 1
      %s297 = scalar_select %p296, %s19, 1
      %p298 = scmp.lt.s32.totalorder %s295, 17
      %s299 = scalar_select %p298, %s295, 17
      %s300 = smul.addr %s299, 3
      %s301 = smul.addr %s297, 54
      %s302 = sadd.s32 %s300, %s301
      %s303 = smul.addr %s302, 4
      %s304 = scalar_lea.vmem %s1, %s303
      %s305 = sadd.s32 %s20, 1
      %s306 = smul.u32 %s305, 8
      %s307 = smul.u32 2, %s306
      %s308 = smul.u32 2, %s20
      %p309 = scmp.lt.s32.totalorder %s19, 1
      %s310 = scalar_select %p309, %s19, 1
      %p311 = scmp.lt.s32.totalorder %s308, 1
      %s312 = scalar_select %p311, %s308, 1
      %s313 = smul.addr %s310, 2
      %s314 = sadd.s32 %s312, %s313
      %s315 = smul.addr %s314, 8
      %s316 = scalar_lea.vmem %s4, %s315
      %s317 = smul.u32 2, %s20
      %v319 = vld [vmem:[%s286] sm:$0xf]
      %v320 = vld [vmem:[%s286 + $0x4] sm:$0xf]
      %v321 = vld [vmem:[%s286 + $0x8] sm:$0x1]
      %v322 = vld [vmem:[%s286 + $0xc] sm:$0xf]
      %v323 = vld [vmem:[%s286 + $0x10] sm:$0xf]
      %v324 = vld [vmem:[%s286 + $0x14] sm:$0x1]
      %v325 = vld [vmem:[%s286 + $0x18] sm:$0xf]
      %v326 = vld [vmem:[%s286 + $0x1c] sm:$0xf]
      %v327 = vld [vmem:[%s286 + $0x20] sm:$0x1]
      %v328 = vld [vmem:[%s286 + $0x24] sm:$0xf]
      %v329 = vld [vmem:[%s286 + $0x28] sm:$0xf]
      %v330 = vld [vmem:[%s286 + $0x2c] sm:$0x1]
      %v331 = vld [vmem:[%s286 + $0x30] sm:$0xf]
      %v332 = vld [vmem:[%s286 + $0x34] sm:$0xf]
      %v333 = vld [vmem:[%s286 + $0x38] sm:$0x1]
      %v334 = vld [vmem:[%s286 + $0x3c] sm:$0xf]
      %v335 = vld [vmem:[%s286 + $0x40] sm:$0xf]
      %v336 = vld [vmem:[%s286 + $0x44] sm:$0x1]
      %v337 = vld [vmem:[%s286 + $0x48] sm:$0xf]
      %v338 = vld [vmem:[%s286 + $0x4c] sm:$0xf]
      %v339 = vld [vmem:[%s286 + $0x50] sm:$0x1]
      %v340 = vld [vmem:[%s286 + $0x54] sm:$0xf]
      %v341 = vld [vmem:[%s286 + $0x58] sm:$0xf]
      %v342 = vld [vmem:[%s286 + $0x5c] sm:$0x1]
      %v343 = vld [vmem:[%s286 + $0x60] sm:$0xf]
      %v344 = vld [vmem:[%s286 + $0x64] sm:$0xf]
      %v345 = vld [vmem:[%s286 + $0x68] sm:$0x1]
      %v346 = vld [vmem:[%s286 + $0x6c] sm:$0xf]
      %v347 = vld [vmem:[%s286 + $0x70] sm:$0xf]
      %v348 = vld [vmem:[%s286 + $0x74] sm:$0x1]
      %v349 = vld [vmem:[%s286 + $0x78] sm:$0xf]
      %v350 = vld [vmem:[%s286 + $0x7c] sm:$0xf]
      %v351 = vld [vmem:[%s286 + $0x80] sm:$0x1]
      %v352 = vld [vmem:[%s286 + $0x84] sm:$0xf]
      %v353 = vld [vmem:[%s286 + $0x88] sm:$0xf]
      %v354 = vld [vmem:[%s286 + $0x8c] sm:$0x1]
      %v355 = vld [vmem:[%s286 + $0x90] sm:$0xf]
      %v356 = vld [vmem:[%s286 + $0x94] sm:$0xf]
      %v357 = vld [vmem:[%s286 + $0x98] sm:$0x1]
      %v358 = vld [vmem:[%s286 + $0x9c] sm:$0xf]
      %v359 = vld [vmem:[%s286 + $0xa0] sm:$0xf]
      %v360 = vld [vmem:[%s286 + $0xa4] sm:$0x1]
      %v361 = vld [vmem:[%s286 + $0xa8] sm:$0xf]
      %v362 = vld [vmem:[%s286 + $0xac] sm:$0xf]
      %v363 = vld [vmem:[%s286 + $0xb0] sm:$0x1]
      %v364 = vld [vmem:[%s286 + $0xb4] sm:$0xf]
      %v365 = vld [vmem:[%s286 + $0xb8] sm:$0xf]
      %v366 = vld [vmem:[%s286 + $0xbc] sm:$0x1]
      %v367 = vld [vmem:[%s304] sm:$0xf]
      %v368 = vld [vmem:[%s304 + $0x4] sm:$0xf]
      %v369 = vld [vmem:[%s304 + $0x8] sm:$0x1]
      %v370 = vld [vmem:[%s304 + $0xc] sm:$0xf]
      %v371 = vld [vmem:[%s304 + $0x10] sm:$0xf]
      %v372 = vld [vmem:[%s304 + $0x14] sm:$0x1]
      %v373 = vld [vmem:[%s2] sm:$0x3]
      %s374 = scalar_lea.vmem %s2, 2
      %v375 = vld [vmem:[%s374] sm:$0x3]
      %v408 = vunpack.c.l.b16 %v322
      %v409 = vunpack.c.l.b16 %v323
      %v410 = vunpack.c.l.b16 %v325
      %v411 = vunpack.c.l.b16 %v326
      %v412 = vunpack.c.l.b16 %v328
      %v413 = vunpack.c.l.b16 %v329
      %v414 = vunpack.c.l.b16 %v331
      %v415 = vunpack.c.l.b16 %v332
      %v416 = vunpack.c.l.b16 %v334
      %v417 = vunpack.c.l.b16 %v335
      %v418 = vunpack.c.l.b16 %v337
      %v419 = vunpack.c.l.b16 %v338
      %v420 = vunpack.c.l.b16 %v340
      %v421 = vunpack.c.l.b16 %v341
      %v422 = vunpack.c.l.b16 %v343
      %v423 = vunpack.c.l.b16 %v344
      %v424 = vunpack.c.l.b16 %v346
      %v425 = vunpack.c.l.b16 %v347
      %v426 = vunpack.c.l.b16 %v349
      %v427 = vunpack.c.l.b16 %v350
      %v428 = vunpack.c.l.b16 %v352
      %v429 = vunpack.c.l.b16 %v353
      %v430 = vunpack.c.l.b16 %v355
      %v431 = vunpack.c.l.b16 %v356
      %v432 = vunpack.c.l.b16 %v358
      %v433 = vunpack.c.l.b16 %v359
      %v434 = vunpack.c.l.b16 %v361
      %v435 = vunpack.c.l.b16 %v362
      %v436 = vunpack.c.l.b16 %v364
      %v437 = vunpack.c.l.b16 %v365
      %v438 = vunpack.c.l.b16 %v367
      %v439 = vunpack.c.l.b16 %v368
      %v440 = vpack.c.b16 %v409, %v408
      %v441 = vpack.c.b16 %v411, %v410
      %v442 = vpack.c.b16 %v413, %v412
      %v443 = vpack.c.b16 %v415, %v414
      %v444 = vpack.c.b16 %v417, %v416
      %v445 = vpack.c.b16 %v419, %v418
      %v446 = vpack.c.b16 %v421, %v420
      %v447 = vpack.c.b16 %v423, %v422
      %v448 = vpack.c.b16 %v425, %v424
      %v449 = vpack.c.b16 %v427, %v426
      %v450 = vpack.c.b16 %v429, %v428
      %v451 = vpack.c.b16 %v431, %v430
      %v452 = vpack.c.b16 %v433, %v432
      %v453 = vpack.c.b16 %v435, %v434
      %v454 = vpack.c.b16 %v437, %v436
      %v455 = vpack.c.b16 %v439, %v438
      %vm456 = vcmask 31744
      %v458 = vsel %vm456, %v440, 0
      %v461 = vsel %vm456, %v441, 0
      %v464 = vsel %vm456, %v442, 0
      %v467 = vsel %vm456, %v443, 0
      %v470 = vsel %vm456, %v444, 0
      %v473 = vsel %vm456, %v445, 0
      %v476 = vsel %vm456, %v446, 0
      %v479 = vsel %vm456, %v447, 0
      %v482 = vsel %vm456, %v448, 0
      %v485 = vsel %vm456, %v449, 0
      %v488 = vsel %vm456, %v450, 0
      %v491 = vsel %vm456, %v451, 0
      %v494 = vsel %vm456, %v452, 0
      %v497 = vsel %vm456, %v453, 0
      %v500 = vsel %vm456, %v454, 0
      %v503 = vsel %vm456, %v455, 0
      %vm505 = vcmask 1041408
      %v507 = vsel %vm505, %v375, 0
      %509 = vmatprep.subr.bf16.mxu0 0
      %510 = vmatpush1.bf16.msra.mxu0 0
      %511 = vmatprep.subr.bf16.mxu0 0
      %512 = vmatpush1.bf16.msra.mxu0 0
      %513 = vmatprep.subr.bf16.mxu0 0
      %514 = vmatpush1.bf16.msra.mxu0 0
      %515 = vmatprep.subr.bf16.mxu0 0
      %516 = vmatpush1.bf16.msra.mxu0 0
      %517 = vmatprep.subr.bf16.mxu0 0
      %518 = vmatpush1.bf16.msra.mxu0 0
      %519 = vmatprep.subr.bf16.mxu0 0
      %520 = vmatpush1.bf16.msra.mxu0 0
      %521 = vmatprep.subr.bf16.mxu0 0
      %522 = vmatpush1.bf16.msra.mxu0 0
      %523 = vmatprep.subr.bf16.mxu0 0
      %524 = vmatpush1.bf16.msra.mxu0 %v507
      %525 = vmatprep.subr.bf16.mxu0 0
      %526 = vmatpush2.bf16.msra.mxu0 0
      %527 = vmatprep.subr.bf16.mxu0 0
      %528 = vmatpush2.bf16.msra.mxu0 0
      %529 = vmatprep.subr.bf16.mxu0 0
      %530 = vmatpush2.bf16.msra.mxu0 0
      %531 = vmatprep.subr.bf16.mxu0 0
      %532 = vmatpush2.bf16.msra.mxu0 0
      %533 = vmatprep.subr.bf16.mxu0 0
      %534 = vmatpush2.bf16.msra.mxu0 0
      %535 = vmatprep.subr.bf16.mxu0 0
      %536 = vmatpush2.bf16.msra.mxu0 0
      %537 = vmatprep.subr.bf16.mxu0 0
      %538 = vmatpush2.bf16.msra.mxu0 0
      %539 = vmatprep.subr.bf16.mxu0 0
      %540 = vmatpush2.bf16.msra.mxu0 0
      %541 = vmatprep.mubr.bf16.mxu0 0
      %542 = vmatmul.mubr.bf16.gmra.mxu0 %v458
      %v543 = vpop.f32.mrf.mxu0
      %v544 = vadd.f32 0.0, %v543
      %v545 = vpop.f32.mrf.mxu0
      %v546 = vpop.f32.mrf.mxu0
      %v547 = vadd.f32 0.0, %v546
      %v548 = vpop.f32.mrf.mxu0
      %549 = vmatprep.mubr.bf16.mxu0 0
      %550 = vmatmul.mubr.bf16.gmra.mxu0 %v461
      %v551 = vpop.f32.mrf.mxu0
      %v552 = vadd.f32 0.0, %v551
      %v553 = vpop.f32.mrf.mxu0
      %v554 = vpop.f32.mrf.mxu0
      %v555 = vadd.f32 0.0, %v554
      %v556 = vpop.f32.mrf.mxu0
      %557 = vmatprep.mubr.bf16.mxu0 0
      %558 = vmatmul.mubr.bf16.gmra.mxu0 %v464
      %v559 = vpop.f32.mrf.mxu0
      %v560 = vadd.f32 0.0, %v559
      %v561 = vpop.f32.mrf.mxu0
      %v562 = vpop.f32.mrf.mxu0
      %v563 = vadd.f32 0.0, %v562
      %v564 = vpop.f32.mrf.mxu0
      %565 = vmatprep.mubr.bf16.mxu0 0
      %566 = vmatmul.mubr.bf16.gmra.mxu0 %v467
      %v567 = vpop.f32.mrf.mxu0
      %v568 = vadd.f32 0.0, %v567
      %v569 = vpop.f32.mrf.mxu0
      %v570 = vpop.f32.mrf.mxu0
      %v571 = vadd.f32 0.0, %v570
      %v572 = vpop.f32.mrf.mxu0
      %573 = vmatprep.mubr.bf16.mxu0 0
      %574 = vmatmul.mubr.bf16.gmra.mxu0 %v470
      %v575 = vpop.f32.mrf.mxu0
      %v576 = vadd.f32 0.0, %v575
      %v577 = vpop.f32.mrf.mxu0
      %v578 = vpop.f32.mrf.mxu0
      %v579 = vadd.f32 0.0, %v578
      %v580 = vpop.f32.mrf.mxu0
      %581 = vmatprep.mubr.bf16.mxu0 0
      %582 = vmatmul.mubr.bf16.gmra.mxu0 %v473
      %v583 = vpop.f32.mrf.mxu0
      %v584 = vadd.f32 0.0, %v583
      %v585 = vpop.f32.mrf.mxu0
      %v586 = vpop.f32.mrf.mxu0
      %v587 = vadd.f32 0.0, %v586
      %v588 = vpop.f32.mrf.mxu0
      %589 = vmatprep.mubr.bf16.mxu0 0
      %590 = vmatmul.mubr.bf16.gmra.mxu0 %v476
      %v591 = vpop.f32.mrf.mxu0
      %v592 = vadd.f32 0.0, %v591
      %v593 = vpop.f32.mrf.mxu0
      %v594 = vpop.f32.mrf.mxu0
      %v595 = vadd.f32 0.0, %v594
      %v596 = vpop.f32.mrf.mxu0
      %597 = vmatprep.mubr.bf16.mxu0 0
      %598 = vmatmul.mubr.bf16.gmra.mxu0 %v479
      %v599 = vpop.f32.mrf.mxu0
      %v600 = vadd.f32 0.0, %v599
      %v601 = vpop.f32.mrf.mxu0
      %v602 = vpop.f32.mrf.mxu0
      %v603 = vadd.f32 0.0, %v602
      %v604 = vpop.f32.mrf.mxu0
      %605 = vmatprep.mubr.bf16.mxu0 0
      %606 = vmatmul.mubr.bf16.gmra.mxu0 %v482
      %v607 = vpop.f32.mrf.mxu0
      %v608 = vadd.f32 0.0, %v607
      %v609 = vpop.f32.mrf.mxu0
      %v610 = vpop.f32.mrf.mxu0
      %v611 = vadd.f32 0.0, %v610
      %v612 = vpop.f32.mrf.mxu0
      %613 = vmatprep.mubr.bf16.mxu0 0
      %614 = vmatmul.mubr.bf16.gmra.mxu0 %v485
      %v615 = vpop.f32.mrf.mxu0
      %v616 = vadd.f32 0.0, %v615
      %v617 = vpop.f32.mrf.mxu0
      %v618 = vpop.f32.mrf.mxu0
      %v619 = vadd.f32 0.0, %v618
      %v620 = vpop.f32.mrf.mxu0
      %621 = vmatprep.mubr.bf16.mxu0 0
      %622 = vmatmul.mubr.bf16.gmra.mxu0 %v488
      %v623 = vpop.f32.mrf.mxu0
      %v624 = vadd.f32 0.0, %v623
      %v625 = vpop.f32.mrf.mxu0
      %v626 = vpop.f32.mrf.mxu0
      %v627 = vadd.f32 0.0, %v626
      %v628 = vpop.f32.mrf.mxu0
      %629 = vmatprep.mubr.bf16.mxu0 0
      %630 = vmatmul.mubr.bf16.gmra.mxu0 %v491
      %v631 = vpop.f32.mrf.mxu0
      %v632 = vadd.f32 0.0, %v631
      %v633 = vpop.f32.mrf.mxu0
      %v634 = vpop.f32.mrf.mxu0
      %v635 = vadd.f32 0.0, %v634
      %v636 = vpop.f32.mrf.mxu0
      %637 = vmatprep.mubr.bf16.mxu0 0
      %638 = vmatmul.mubr.bf16.gmra.mxu0 %v494
      %v639 = vpop.f32.mrf.mxu0
      %v640 = vadd.f32 0.0, %v639
      %v641 = vpop.f32.mrf.mxu0
      %v642 = vpop.f32.mrf.mxu0
      %v643 = vadd.f32 0.0, %v642
      %v644 = vpop.f32.mrf.mxu0
      %645 = vmatprep.mubr.bf16.mxu0 0
      %646 = vmatmul.mubr.bf16.gmra.mxu0 %v497
      %v647 = vpop.f32.mrf.mxu0
      %v648 = vadd.f32 0.0, %v647
      %v649 = vpop.f32.mrf.mxu0
      %v650 = vpop.f32.mrf.mxu0
      %v651 = vadd.f32 0.0, %v650
      %v652 = vpop.f32.mrf.mxu0
      %653 = vmatprep.mubr.bf16.mxu0 0
      %654 = vmatmul.mubr.bf16.gmra.mxu0 %v500
      %v655 = vpop.f32.mrf.mxu0
      %v656 = vadd.f32 0.0, %v655
      %v657 = vpop.f32.mrf.mxu0
      %v658 = vpop.f32.mrf.mxu0
      %v659 = vadd.f32 0.0, %v658
      %v660 = vpop.f32.mrf.mxu0
      %661 = vmatprep.mubr.bf16.mxu0 0
      %662 = vmatmul.mubr.bf16.gmra.mxu0 %v503
      %v663 = vpop.f32.mrf.mxu0
      %v664 = vadd.f32 0.0, %v663
      %v665 = vpop.f32.mrf.mxu0
      %v666 = vpop.f32.mrf.mxu0
      %v667 = vadd.f32 0.0, %v666
      %v668 = vpop.f32.mrf.mxu0
      %669 = vdwg.mxu0
      %v672 = vunpack.c.l.b16 %v319
      %v673 = vunpack.c.l.b16 %v320
      %v674 = vpack.c.b16 %v673, %v672
      %v676 = vsel %vm456, %v674, 0
      %v679 = vsel %vm505, %v373, 0
      %681 = vmatprep.subr.bf16.mxu0 0
      %682 = vmatpush1.bf16.msra.mxu0 0
      %683 = vmatprep.subr.bf16.mxu0 0
      %684 = vmatpush1.bf16.msra.mxu0 0
      %685 = vmatprep.subr.bf16.mxu0 0
      %686 = vmatpush1.bf16.msra.mxu0 0
      %687 = vmatprep.subr.bf16.mxu0 0
      %688 = vmatpush1.bf16.msra.mxu0 0
      %689 = vmatprep.subr.bf16.mxu0 0
      %690 = vmatpush1.bf16.msra.mxu0 0
      %691 = vmatprep.subr.bf16.mxu0 0
      %692 = vmatpush1.bf16.msra.mxu0 0
      %693 = vmatprep.subr.bf16.mxu0 0
      %694 = vmatpush1.bf16.msra.mxu0 0
      %695 = vmatprep.subr.bf16.mxu0 0
      %696 = vmatpush1.bf16.msra.mxu0 %v679
      %697 = vmatprep.subr.bf16.mxu0 0
      %698 = vmatpush2.bf16.msra.mxu0 0
      %699 = vmatprep.subr.bf16.mxu0 0
      %700 = vmatpush2.bf16.msra.mxu0 0
      %701 = vmatprep.subr.bf16.mxu0 0
      %702 = vmatpush2.bf16.msra.mxu0 0
      %703 = vmatprep.subr.bf16.mxu0 0
      %704 = vmatpush2.bf16.msra.mxu0 0
      %705 = vmatprep.subr.bf16.mxu0 0
      %706 = vmatpush2.bf16.msra.mxu0 0
      %707 = vmatprep.subr.bf16.mxu0 0
      %708 = vmatpush2.bf16.msra.mxu0 0
      %709 = vmatprep.subr.bf16.mxu0 0
      %710 = vmatpush2.bf16.msra.mxu0 0
      %711 = vmatprep.subr.bf16.mxu0 0
      %712 = vmatpush2.bf16.msra.mxu0 0
      %713 = vmatprep.mubr.bf16.mxu0 0
      %714 = vmatmul.mubr.bf16.gmra.mxu0 %v676
      %v715 = vpop.f32.mrf.mxu0
      %v716 = vadd.f32 %v544, %v715
      %v717 = vpop.f32.mrf.mxu0
      %v718 = vpop.f32.mrf.mxu0
      %v719 = vadd.f32 %v547, %v718
      %v720 = vpop.f32.mrf.mxu0
      %721 = vmatprep.mubr.bf16.mxu0 0
      %722 = vmatmul.mubr.bf16.gmra.mxu0 %v458
      %v723 = vpop.f32.mrf.mxu0
      %v724 = vadd.f32 %v552, %v723
      %v725 = vpop.f32.mrf.mxu0
      %v726 = vpop.f32.mrf.mxu0
      %v727 = vadd.f32 %v555, %v726
      %v728 = vpop.f32.mrf.mxu0
      %729 = vmatprep.mubr.bf16.mxu0 0
      %730 = vmatmul.mubr.bf16.gmra.mxu0 %v461
      %v731 = vpop.f32.mrf.mxu0
      %v732 = vadd.f32 %v560, %v731
      %v733 = vpop.f32.mrf.mxu0
      %v734 = vpop.f32.mrf.mxu0
      %v735 = vadd.f32 %v563, %v734
      %v736 = vpop.f32.mrf.mxu0
      %737 = vmatprep.mubr.bf16.mxu0 0
      %738 = vmatmul.mubr.bf16.gmra.mxu0 %v464
      %v739 = vpop.f32.mrf.mxu0
      %v740 = vadd.f32 %v568, %v739
      %v741 = vpop.f32.mrf.mxu0
      %v742 = vpop.f32.mrf.mxu0
      %v743 = vadd.f32 %v571, %v742
      %v744 = vpop.f32.mrf.mxu0
      %745 = vmatprep.mubr.bf16.mxu0 0
      %746 = vmatmul.mubr.bf16.gmra.mxu0 %v467
      %v747 = vpop.f32.mrf.mxu0
      %v748 = vadd.f32 %v576, %v747
      %v749 = vpop.f32.mrf.mxu0
      %v750 = vpop.f32.mrf.mxu0
      %v751 = vadd.f32 %v579, %v750
      %v752 = vpop.f32.mrf.mxu0
      %753 = vmatprep.mubr.bf16.mxu0 0
      %754 = vmatmul.mubr.bf16.gmra.mxu0 %v470
      %v755 = vpop.f32.mrf.mxu0
      %v756 = vadd.f32 %v584, %v755
      %v757 = vpop.f32.mrf.mxu0
      %v758 = vpop.f32.mrf.mxu0
      %v759 = vadd.f32 %v587, %v758
      %v760 = vpop.f32.mrf.mxu0
      %761 = vmatprep.mubr.bf16.mxu0 0
      %762 = vmatmul.mubr.bf16.gmra.mxu0 %v473
      %v763 = vpop.f32.mrf.mxu0
      %v764 = vadd.f32 %v592, %v763
      %v765 = vpop.f32.mrf.mxu0
      %v766 = vpop.f32.mrf.mxu0
      %v767 = vadd.f32 %v595, %v766
      %v768 = vpop.f32.mrf.mxu0
      %769 = vmatprep.mubr.bf16.mxu0 0
      %770 = vmatmul.mubr.bf16.gmra.mxu0 %v476
      %v771 = vpop.f32.mrf.mxu0
      %v772 = vadd.f32 %v600, %v771
      %v773 = vpop.f32.mrf.mxu0
      %v774 = vpop.f32.mrf.mxu0
      %v775 = vadd.f32 %v603, %v774
      %v776 = vpop.f32.mrf.mxu0
      %777 = vmatprep.mubr.bf16.mxu0 0
      %778 = vmatmul.mubr.bf16.gmra.mxu0 %v479
      %v779 = vpop.f32.mrf.mxu0
      %v780 = vadd.f32 %v608, %v779
      %v781 = vpop.f32.mrf.mxu0
      %v782 = vpop.f32.mrf.mxu0
      %v783 = vadd.f32 %v611, %v782
      %v784 = vpop.f32.mrf.mxu0
      %785 = vmatprep.mubr.bf16.mxu0 0
      %786 = vmatmul.mubr.bf16.gmra.mxu0 %v482
      %v787 = vpop.f32.mrf.mxu0
      %v788 = vadd.f32 %v616, %v787
      %v789 = vpop.f32.mrf.mxu0
      %v790 = vpop.f32.mrf.mxu0
      %v791 = vadd.f32 %v619, %v790
      %v792 = vpop.f32.mrf.mxu0
      %793 = vmatprep.mubr.bf16.mxu0 0
      %794 = vmatmul.mubr.bf16.gmra.mxu0 %v485
      %v795 = vpop.f32.mrf.mxu0
      %v796 = vadd.f32 %v624, %v795
      %v797 = vpop.f32.mrf.mxu0
      %v798 = vpop.f32.mrf.mxu0
      %v799 = vadd.f32 %v627, %v798
      %v800 = vpop.f32.mrf.mxu0
      %801 = vmatprep.mubr.bf16.mxu0 0
      %802 = vmatmul.mubr.bf16.gmra.mxu0 %v488
      %v803 = vpop.f32.mrf.mxu0
      %v804 = vadd.f32 %v632, %v803
      %v805 = vpop.f32.mrf.mxu0
      %v806 = vpop.f32.mrf.mxu0
      %v807 = vadd.f32 %v635, %v806
      %v808 = vpop.f32.mrf.mxu0
      %809 = vmatprep.mubr.bf16.mxu0 0
      %810 = vmatmul.mubr.bf16.gmra.mxu0 %v491
      %v811 = vpop.f32.mrf.mxu0
      %v812 = vadd.f32 %v640, %v811
      %v813 = vpop.f32.mrf.mxu0
      %v814 = vpop.f32.mrf.mxu0
      %v815 = vadd.f32 %v643, %v814
      %v816 = vpop.f32.mrf.mxu0
      %817 = vmatprep.mubr.bf16.mxu0 0
      %818 = vmatmul.mubr.bf16.gmra.mxu0 %v494
      %v819 = vpop.f32.mrf.mxu0
      %v820 = vadd.f32 %v648, %v819
      %v821 = vpop.f32.mrf.mxu0
      %v822 = vpop.f32.mrf.mxu0
      %v823 = vadd.f32 %v651, %v822
      %v824 = vpop.f32.mrf.mxu0
      %825 = vmatprep.mubr.bf16.mxu0 0
      %826 = vmatmul.mubr.bf16.gmra.mxu0 %v497
      %v827 = vpop.f32.mrf.mxu0
      %v828 = vadd.f32 %v656, %v827
      %v829 = vpop.f32.mrf.mxu0
      %v830 = vpop.f32.mrf.mxu0
      %v831 = vadd.f32 %v659, %v830
      %v832 = vpop.f32.mrf.mxu0
      %833 = vmatprep.mubr.bf16.mxu0 0
      %834 = vmatmul.mubr.bf16.gmra.mxu0 %v500
      %v835 = vpop.f32.mrf.mxu0
      %v836 = vadd.f32 %v664, %v835
      %v837 = vpop.f32.mrf.mxu0
      %v838 = vpop.f32.mrf.mxu0
      %v839 = vadd.f32 %v667, %v838
      %v840 = vpop.f32.mrf.mxu0
      %841 = vdwg.mxu0
      %s842 = scalar_lea.vmem %s2, 4
      %v843 = vld [vmem:[%s842] sm:$0x3]
      %v846 = vunpack.c.l.b16 %v370
      %v847 = vunpack.c.l.b16 %v371
      %v848 = vpack.c.b16 %v847, %v846
      %v850 = vsel %vm456, %v848, 0
      %v853 = vsel %vm505, %v843, 0
      %855 = vmatprep.subr.bf16.mxu0 0
      %856 = vmatpush1.bf16.msra.mxu0 0
      %857 = vmatprep.subr.bf16.mxu0 0
      %858 = vmatpush1.bf16.msra.mxu0 0
      %859 = vmatprep.subr.bf16.mxu0 0
      %860 = vmatpush1.bf16.msra.mxu0 0
      %861 = vmatprep.subr.bf16.mxu0 0
      %862 = vmatpush1.bf16.msra.mxu0 0
      %863 = vmatprep.subr.bf16.mxu0 0
      %864 = vmatpush1.bf16.msra.mxu0 0
      %865 = vmatprep.subr.bf16.mxu0 0
      %866 = vmatpush1.bf16.msra.mxu0 0
      %867 = vmatprep.subr.bf16.mxu0 0
      %868 = vmatpush1.bf16.msra.mxu0 0
      %869 = vmatprep.subr.bf16.mxu0 0
      %870 = vmatpush1.bf16.msra.mxu0 %v853
      %871 = vmatprep.subr.bf16.mxu0 0
      %872 = vmatpush2.bf16.msra.mxu0 0
      %873 = vmatprep.subr.bf16.mxu0 0
      %874 = vmatpush2.bf16.msra.mxu0 0
      %875 = vmatprep.subr.bf16.mxu0 0
      %876 = vmatpush2.bf16.msra.mxu0 0
      %877 = vmatprep.subr.bf16.mxu0 0
      %878 = vmatpush2.bf16.msra.mxu0 0
      %879 = vmatprep.subr.bf16.mxu0 0
      %880 = vmatpush2.bf16.msra.mxu0 0
      %881 = vmatprep.subr.bf16.mxu0 0
      %882 = vmatpush2.bf16.msra.mxu0 0
      %883 = vmatprep.subr.bf16.mxu0 0
      %884 = vmatpush2.bf16.msra.mxu0 0
      %885 = vmatprep.subr.bf16.mxu0 0
      %886 = vmatpush2.bf16.msra.mxu0 0
      %887 = vmatprep.mubr.bf16.mxu0 0
      %888 = vmatmul.mubr.bf16.gmra.mxu0 %v461
      %v889 = vpop.f32.mrf.mxu0
      %v890 = vadd.f32 0.0, %v889
      %v891 = vpop.f32.mrf.mxu0
      %v892 = vpop.f32.mrf.mxu0
      %v893 = vadd.f32 0.0, %v892
      %v894 = vpop.f32.mrf.mxu0
      %895 = vmatprep.mubr.bf16.mxu0 0
      %896 = vmatmul.mubr.bf16.gmra.mxu0 %v464
      %v897 = vpop.f32.mrf.mxu0
      %v898 = vadd.f32 0.0, %v897
      %v899 = vpop.f32.mrf.mxu0
      %v900 = vpop.f32.mrf.mxu0
      %v901 = vadd.f32 0.0, %v900
      %v902 = vpop.f32.mrf.mxu0
      %903 = vmatprep.mubr.bf16.mxu0 0
      %904 = vmatmul.mubr.bf16.gmra.mxu0 %v467
      %v905 = vpop.f32.mrf.mxu0
      %v906 = vadd.f32 0.0, %v905
      %v907 = vpop.f32.mrf.mxu0
      %v908 = vpop.f32.mrf.mxu0
      %v909 = vadd.f32 0.0, %v908
      %v910 = vpop.f32.mrf.mxu0
      %911 = vmatprep.mubr.bf16.mxu0 0
      %912 = vmatmul.mubr.bf16.gmra.mxu0 %v470
      %v913 = vpop.f32.mrf.mxu0
      %v914 = vadd.f32 0.0, %v913
      %v915 = vpop.f32.mrf.mxu0
      %v916 = vpop.f32.mrf.mxu0
      %v917 = vadd.f32 0.0, %v916
      %v918 = vpop.f32.mrf.mxu0
      %919 = vmatprep.mubr.bf16.mxu0 0
      %920 = vmatmul.mubr.bf16.gmra.mxu0 %v473
      %v921 = vpop.f32.mrf.mxu0
      %v922 = vadd.f32 0.0, %v921
      %v923 = vpop.f32.mrf.mxu0
      %v924 = vpop.f32.mrf.mxu0
      %v925 = vadd.f32 0.0, %v924
      %v926 = vpop.f32.mrf.mxu0
      %927 = vmatprep.mubr.bf16.mxu0 0
      %928 = vmatmul.mubr.bf16.gmra.mxu0 %v476
      %v929 = vpop.f32.mrf.mxu0
      %v930 = vadd.f32 0.0, %v929
      %v931 = vpop.f32.mrf.mxu0
      %v932 = vpop.f32.mrf.mxu0
      %v933 = vadd.f32 0.0, %v932
      %v934 = vpop.f32.mrf.mxu0
      %935 = vmatprep.mubr.bf16.mxu0 0
      %936 = vmatmul.mubr.bf16.gmra.mxu0 %v479
      %v937 = vpop.f32.mrf.mxu0
      %v938 = vadd.f32 0.0, %v937
      %v939 = vpop.f32.mrf.mxu0
      %v940 = vpop.f32.mrf.mxu0
      %v941 = vadd.f32 0.0, %v940
      %v942 = vpop.f32.mrf.mxu0
      %943 = vmatprep.mubr.bf16.mxu0 0
      %944 = vmatmul.mubr.bf16.gmra.mxu0 %v482
      %v945 = vpop.f32.mrf.mxu0
      %v946 = vadd.f32 0.0, %v945
      %v947 = vpop.f32.mrf.mxu0
      %v948 = vpop.f32.mrf.mxu0
      %v949 = vadd.f32 0.0, %v948
      %v950 = vpop.f32.mrf.mxu0
      %951 = vmatprep.mubr.bf16.mxu0 0
      %952 = vmatmul.mubr.bf16.gmra.mxu0 %v485
      %v953 = vpop.f32.mrf.mxu0
      %v954 = vadd.f32 0.0, %v953
      %v955 = vpop.f32.mrf.mxu0
      %v956 = vpop.f32.mrf.mxu0
      %v957 = vadd.f32 0.0, %v956
      %v958 = vpop.f32.mrf.mxu0
      %959 = vmatprep.mubr.bf16.mxu0 0
      %960 = vmatmul.mubr.bf16.gmra.mxu0 %v488
      %v961 = vpop.f32.mrf.mxu0
      %v962 = vadd.f32 0.0, %v961
      %v963 = vpop.f32.mrf.mxu0
      %v964 = vpop.f32.mrf.mxu0
      %v965 = vadd.f32 0.0, %v964
      %v966 = vpop.f32.mrf.mxu0
      %967 = vmatprep.mubr.bf16.mxu0 0
      %968 = vmatmul.mubr.bf16.gmra.mxu0 %v491
      %v969 = vpop.f32.mrf.mxu0
      %v970 = vadd.f32 0.0, %v969
      %v971 = vpop.f32.mrf.mxu0
      %v972 = vpop.f32.mrf.mxu0
      %v973 = vadd.f32 0.0, %v972
      %v974 = vpop.f32.mrf.mxu0
      %975 = vmatprep.mubr.bf16.mxu0 0
      %976 = vmatmul.mubr.bf16.gmra.mxu0 %v494
      %v977 = vpop.f32.mrf.mxu0
      %v978 = vadd.f32 0.0, %v977
      %v979 = vpop.f32.mrf.mxu0
      %v980 = vpop.f32.mrf.mxu0
      %v981 = vadd.f32 0.0, %v980
      %v982 = vpop.f32.mrf.mxu0
      %983 = vmatprep.mubr.bf16.mxu0 0
      %984 = vmatmul.mubr.bf16.gmra.mxu0 %v497
      %v985 = vpop.f32.mrf.mxu0
      %v986 = vadd.f32 0.0, %v985
      %v987 = vpop.f32.mrf.mxu0
      %v988 = vpop.f32.mrf.mxu0
      %v989 = vadd.f32 0.0, %v988
      %v990 = vpop.f32.mrf.mxu0
      %991 = vmatprep.mubr.bf16.mxu0 0
      %992 = vmatmul.mubr.bf16.gmra.mxu0 %v500
      %v993 = vpop.f32.mrf.mxu0
      %v994 = vadd.f32 0.0, %v993
      %v995 = vpop.f32.mrf.mxu0
      %v996 = vpop.f32.mrf.mxu0
      %v997 = vadd.f32 0.0, %v996
      %v998 = vpop.f32.mrf.mxu0
      %999 = vmatprep.mubr.bf16.mxu0 0
      %1000 = vmatmul.mubr.bf16.gmra.mxu0 %v503
      %v1001 = vpop.f32.mrf.mxu0
      %v1002 = vadd.f32 0.0, %v1001
      %v1003 = vpop.f32.mrf.mxu0
      %v1004 = vpop.f32.mrf.mxu0
      %v1005 = vadd.f32 0.0, %v1004
      %v1006 = vpop.f32.mrf.mxu0
      %1007 = vmatprep.mubr.bf16.mxu0 0
      %1008 = vmatmul.mubr.bf16.gmra.mxu0 %v850
      %v1009 = vpop.f32.mrf.mxu0
      %v1010 = vadd.f32 0.0, %v1009
      %v1011 = vpop.f32.mrf.mxu0
      %v1012 = vpop.f32.mrf.mxu0
      %v1013 = vadd.f32 0.0, %v1012
      %v1014 = vpop.f32.mrf.mxu0
      %1015 = vdwg.mxu0
      %v1016 = vadd.f32 %v716, %v890
      %v1017 = vadd.f32 %v719, %v893
      %v1018 = vadd.f32 %v724, %v898
      %v1019 = vadd.f32 %v727, %v901
      %v1020 = vadd.f32 %v732, %v906
      %v1021 = vadd.f32 %v735, %v909
      %v1022 = vadd.f32 %v740, %v914
      %v1023 = vadd.f32 %v743, %v917
      %v1024 = vadd.f32 %v748, %v922
      %v1025 = vadd.f32 %v751, %v925
      %v1026 = vadd.f32 %v756, %v930
      %v1027 = vadd.f32 %v759, %v933
      %v1028 = vadd.f32 %v764, %v938
      %v1029 = vadd.f32 %v767, %v941
      %v1030 = vadd.f32 %v772, %v946
      %v1031 = vadd.f32 %v775, %v949
      %v1032 = vadd.f32 %v780, %v954
      %v1033 = vadd.f32 %v783, %v957
      %v1034 = vadd.f32 %v788, %v962
      %v1035 = vadd.f32 %v791, %v965
      %v1036 = vadd.f32 %v796, %v970
      %v1037 = vadd.f32 %v799, %v973
      %v1038 = vadd.f32 %v804, %v978
      %v1039 = vadd.f32 %v807, %v981
      %v1040 = vadd.f32 %v812, %v986
      %v1041 = vadd.f32 %v815, %v989
      %v1042 = vadd.f32 %v820, %v994
      %v1043 = vadd.f32 %v823, %v997
      %v1044 = vadd.f32 %v828, %v1002
      %v1045 = vadd.f32 %v831, %v1005
      %v1046 = vadd.f32 %v836, %v1010
      %v1047 = vadd.f32 %v839, %v1013
      %vm1048 = vsmask.f32 3328
      %vm1049 = vsmask.f32 7440
      %vm1050 = vmor %vm1048, %vm1049
      %v1052 = vshrl.u32 %v319, 16
      %v1054 = vrot.slane %v1052, 4
      %v1055 = vshll.u32 %v319, 16
      %v1057 = vrot.slane %v1055, 5
      %v1058 = vor.u32 %v1054, %v1057
      %v1059 = vrot.slane %v1058, 4
      %v1061 = vshll.u32 %v320, 16
      %v1063 = vrot.slane %v1061, 5
      %v1064 = vsel %vm1050, %v1059, %v1063
      %v1065 = vshrl.u32 %v320, 16
      %v1067 = vrot.slane %v1065, 4
      %v1068 = vor.u32 %v1067, %v1063
      %v1069 = vrot.slane %v1068, 4
      %v1071 = vshll.u32 %v321, 16
      %v1073 = vrot.slane %v1071, 5
      %v1074 = vsel %vm1050, %v1069, %v1073
      %v1076 = vshrl.u32 %v322, 16
      %v1078 = vrot.slane %v1076, 4
      %v1079 = vshll.u32 %v322, 16
      %v1081 = vrot.slane %v1079, 5
      %v1082 = vor.u32 %v1078, %v1081
      %v1083 = vrot.slane %v1082, 4
      %v1085 = vshll.u32 %v323, 16
      %v1087 = vrot.slane %v1085, 5
      %v1088 = vsel %vm1050, %v1083, %v1087
      %v1089 = vshrl.u32 %v323, 16
      %v1091 = vrot.slane %v1089, 4
      %v1092 = vor.u32 %v1091, %v1087
      %v1093 = vrot.slane %v1092, 4
      %v1095 = vshll.u32 %v324, 16
      %v1097 = vrot.slane %v1095, 5
      %v1098 = vsel %vm1050, %v1093, %v1097
      %v1100 = vshrl.u32 %v325, 16
      %v1102 = vrot.slane %v1100, 4
      %v1103 = vshll.u32 %v325, 16
      %v1105 = vrot.slane %v1103, 5
      %v1106 = vor.u32 %v1102, %v1105
      %v1107 = vrot.slane %v1106, 4
      %v1109 = vshll.u32 %v326, 16
      %v1111 = vrot.slane %v1109, 5
      %v1112 = vsel %vm1050, %v1107, %v1111
      %v1113 = vshrl.u32 %v326, 16
      %v1115 = vrot.slane %v1113, 4
      %v1116 = vor.u32 %v1115, %v1111
      %v1117 = vrot.slane %v1116, 4
      %v1119 = vshll.u32 %v327, 16
      %v1121 = vrot.slane %v1119, 5
      %v1122 = vsel %vm1050, %v1117, %v1121
      %v1124 = vshrl.u32 %v328, 16
      %v1126 = vrot.slane %v1124, 4
      %v1127 = vshll.u32 %v328, 16
      %v1129 = vrot.slane %v1127, 5
      %v1130 = vor.u32 %v1126, %v1129
      %v1131 = vrot.slane %v1130, 4
      %v1133 = vshll.u32 %v329, 16
      %v1135 = vrot.slane %v1133, 5
      %v1136 = vsel %vm1050, %v1131, %v1135
      %v1137 = vshrl.u32 %v329, 16
      %v1139 = vrot.slane %v1137, 4
      %v1140 = vor.u32 %v1139, %v1135
      %v1141 = vrot.slane %v1140, 4
      %v1143 = vshll.u32 %v330, 16
      %v1145 = vrot.slane %v1143, 5
      %v1146 = vsel %vm1050, %v1141, %v1145
      %v1148 = vshrl.u32 %v331, 16
      %v1150 = vrot.slane %v1148, 4
      %v1151 = vshll.u32 %v331, 16
      %v1153 = vrot.slane %v1151, 5
      %v1154 = vor.u32 %v1150, %v1153
      %v1155 = vrot.slane %v1154, 4
      %v1157 = vshll.u32 %v332, 16
      %v1159 = vrot.slane %v1157, 5
      %v1160 = vsel %vm1050, %v1155, %v1159
      %v1161 = vshrl.u32 %v332, 16
      %v1163 = vrot.slane %v1161, 4
      %v1164 = vor.u32 %v1163, %v1159
      %v1165 = vrot.slane %v1164, 4
      %v1167 = vshll.u32 %v333, 16
      %v1169 = vrot.slane %v1167, 5
      %v1170 = vsel %vm1050, %v1165, %v1169
      %v1172 = vshrl.u32 %v334, 16
      %v1174 = vrot.slane %v1172, 4
      %v1175 = vshll.u32 %v334, 16
      %v1177 = vrot.slane %v1175, 5
      %v1178 = vor.u32 %v1174, %v1177
      %v1179 = vrot.slane %v1178, 4
      %v1181 = vshll.u32 %v335, 16
      %v1183 = vrot.slane %v1181, 5
      %v1184 = vsel %vm1050, %v1179, %v1183
      %v1185 = vshrl.u32 %v335, 16
      %v1187 = vrot.slane %v1185, 4
      %v1188 = vor.u32 %v1187, %v1183
      %v1189 = vrot.slane %v1188, 4
      %v1191 = vshll.u32 %v336, 16
      %v1193 = vrot.slane %v1191, 5
      %v1194 = vsel %vm1050, %v1189, %v1193
      %v1196 = vshrl.u32 %v337, 16
      %v1198 = vrot.slane %v1196, 4
      %v1199 = vshll.u32 %v337, 16
      %v1201 = vrot.slane %v1199, 5
      %v1202 = vor.u32 %v1198, %v1201
      %v1203 = vrot.slane %v1202, 4
      %v1205 = vshll.u32 %v338, 16
      %v1207 = vrot.slane %v1205, 5
      %v1208 = vsel %vm1050, %v1203, %v1207
      %v1209 = vshrl.u32 %v338, 16
      %v1211 = vrot.slane %v1209, 4
      %v1212 = vor.u32 %v1211, %v1207
      %v1213 = vrot.slane %v1212, 4
      %v1215 = vshll.u32 %v339, 16
      %v1217 = vrot.slane %v1215, 5
      %v1218 = vsel %vm1050, %v1213, %v1217
      %v1220 = vshrl.u32 %v340, 16
      %v1222 = vrot.slane %v1220, 4
      %v1223 = vshll.u32 %v340, 16
      %v1225 = vrot.slane %v1223, 5
      %v1226 = vor.u32 %v1222, %v1225
      %v1227 = vrot.slane %v1226, 4
      %v1229 = vshll.u32 %v341, 16
      %v1231 = vrot.slane %v1229, 5
      %v1232 = vsel %vm1050, %v1227, %v1231
      %v1233 = vshrl.u32 %v341, 16
      %v1235 = vrot.slane %v1233, 4
      %v1236 = vor.u32 %v1235, %v1231
      %v1237 = vrot.slane %v1236, 4
      %v1239 = vshll.u32 %v342, 16
      %v1241 = vrot.slane %v1239, 5
      %v1242 = vsel %vm1050, %v1237, %v1241
      %v1244 = vshrl.u32 %v343, 16
      %v1246 = vrot.slane %v1244, 4
      %v1247 = vshll.u32 %v343, 16
      %v1249 = vrot.slane %v1247, 5
      %v1250 = vor.u32 %v1246, %v1249
      %v1251 = vrot.slane %v1250, 4
      %v1253 = vshll.u32 %v344, 16
      %v1255 = vrot.slane %v1253, 5
      %v1256 = vsel %vm1050, %v1251, %v1255
      %v1257 = vshrl.u32 %v344, 16
      %v1259 = vrot.slane %v1257, 4
      %v1260 = vor.u32 %v1259, %v1255
      %v1261 = vrot.slane %v1260, 4
      %v1263 = vshll.u32 %v345, 16
      %v1265 = vrot.slane %v1263, 5
      %v1266 = vsel %vm1050, %v1261, %v1265
      %v1268 = vshrl.u32 %v346, 16
      %v1270 = vrot.slane %v1268, 4
      %v1271 = vshll.u32 %v346, 16
      %v1273 = vrot.slane %v1271, 5
      %v1274 = vor.u32 %v1270, %v1273
      %v1275 = vrot.slane %v1274, 4
      %v1277 = vshll.u32 %v347, 16
      %v1279 = vrot.slane %v1277, 5
      %v1280 = vsel %vm1050, %v1275, %v1279
      %v1281 = vshrl.u32 %v347, 16
      %v1283 = vrot.slane %v1281, 4
      %v1284 = vor.u32 %v1283, %v1279
      %v1285 = vrot.slane %v1284, 4
      %v1287 = vshll.u32 %v348, 16
      %v1289 = vrot.slane %v1287, 5
      %v1290 = vsel %vm1050, %v1285, %v1289
      %v1292 = vshrl.u32 %v349, 16
      %v1294 = vrot.slane %v1292, 4
      %v1295 = vshll.u32 %v349, 16
      %v1297 = vrot.slane %v1295, 5
      %v1298 = vor.u32 %v1294, %v1297
      %v1299 = vrot.slane %v1298, 4
      %v1301 = vshll.u32 %v350, 16
      %v1303 = vrot.slane %v1301, 5
      %v1304 = vsel %vm1050, %v1299, %v1303
      %v1305 = vshrl.u32 %v350, 16
      %v1307 = vrot.slane %v1305, 4
      %v1308 = vor.u32 %v1307, %v1303
      %v1309 = vrot.slane %v1308, 4
      %v1311 = vshll.u32 %v351, 16
      %v1313 = vrot.slane %v1311, 5
      %v1314 = vsel %vm1050, %v1309, %v1313
      %v1316 = vshrl.u32 %v352, 16
      %v1318 = vrot.slane %v1316, 4
      %v1319 = vshll.u32 %v352, 16
      %v1321 = vrot.slane %v1319, 5
      %v1322 = vor.u32 %v1318, %v1321
      %v1323 = vrot.slane %v1322, 4
      %v1325 = vshll.u32 %v353, 16
      %v1327 = vrot.slane %v1325, 5
      %v1328 = vsel %vm1050, %v1323, %v1327
      %v1329 = vshrl.u32 %v353, 16
      %v1331 = vrot.slane %v1329, 4
      %v1332 = vor.u32 %v1331, %v1327
      %v1333 = vrot.slane %v1332, 4
      %v1335 = vshll.u32 %v354, 16
      %v1337 = vrot.slane %v1335, 5
      %v1338 = vsel %vm1050, %v1333, %v1337
      %v1340 = vshrl.u32 %v355, 16
      %v1342 = vrot.slane %v1340, 4
      %v1343 = vshll.u32 %v355, 16
      %v1345 = vrot.slane %v1343, 5
      %v1346 = vor.u32 %v1342, %v1345
      %v1347 = vrot.slane %v1346, 4
      %v1349 = vshll.u32 %v356, 16
      %v1351 = vrot.slane %v1349, 5
      %v1352 = vsel %vm1050, %v1347, %v1351
      %v1353 = vshrl.u32 %v356, 16
      %v1355 = vrot.slane %v1353, 4
      %v1356 = vor.u32 %v1355, %v1351
      %v1357 = vrot.slane %v1356, 4
      %v1359 = vshll.u32 %v357, 16
      %v1361 = vrot.slane %v1359, 5
      %v1362 = vsel %vm1050, %v1357, %v1361
      %v1364 = vshrl.u32 %v358, 16
      %v1366 = vrot.slane %v1364, 4
      %v1367 = vshll.u32 %v358, 16
      %v1369 = vrot.slane %v1367, 5
      %v1370 = vor.u32 %v1366, %v1369
      %v1371 = vrot.slane %v1370, 4
      %v1373 = vshll.u32 %v359, 16
      %v1375 = vrot.slane %v1373, 5
      %v1376 = vsel %vm1050, %v1371, %v1375
      %v1377 = vshrl.u32 %v359, 16
      %v1379 = vrot.slane %v1377, 4
      %v1380 = vor.u32 %v1379, %v1375
      %v1381 = vrot.slane %v1380, 4
      %v1383 = vshll.u32 %v360, 16
      %v1385 = vrot.slane %v1383, 5
      %v1386 = vsel %vm1050, %v1381, %v1385
      %v1388 = vshrl.u32 %v361, 16
      %v1390 = vrot.slane %v1388, 4
      %v1391 = vshll.u32 %v361, 16
      %v1393 = vrot.slane %v1391, 5
      %v1394 = vor.u32 %v1390, %v1393
      %v1395 = vrot.slane %v1394, 4
      %v1397 = vshll.u32 %v362, 16
      %v1399 = vrot.slane %v1397, 5
      %v1400 = vsel %vm1050, %v1395, %v1399
      %v1401 = vshrl.u32 %v362, 16
      %v1403 = vrot.slane %v1401, 4
      %v1404 = vor.u32 %v1403, %v1399
      %v1405 = vrot.slane %v1404, 4
      %v1407 = vshll.u32 %v363, 16
      %v1409 = vrot.slane %v1407, 5
      %v1410 = vsel %vm1050, %v1405, %v1409
      %v1412 = vshrl.u32 %v364, 16
      %v1414 = vrot.slane %v1412, 4
      %v1415 = vshll.u32 %v364, 16
      %v1417 = vrot.slane %v1415, 5
      %v1418 = vor.u32 %v1414, %v1417
      %v1419 = vrot.slane %v1418, 4
      %v1421 = vshll.u32 %v365, 16
      %v1423 = vrot.slane %v1421, 5
      %v1424 = vsel %vm1050, %v1419, %v1423
      %v1425 = vshrl.u32 %v365, 16
      %v1427 = vrot.slane %v1425, 4
      %v1428 = vor.u32 %v1427, %v1423
      %v1429 = vrot.slane %v1428, 4
      %v1431 = vshll.u32 %v366, 16
      %v1433 = vrot.slane %v1431, 5
      %v1434 = vsel %vm1050, %v1429, %v1433
      %s1435 = scalar_lea.vmem %s2, 6
      %v1436 = vld [vmem:[%s1435] sm:$0x3]
      %v1437 = vunpack.c.l.b16 %v1064
      %v1438 = vunpack.c.l.b16 %v1074
      %v1439 = vunpack.c.l.b16 %v1088
      %v1440 = vunpack.c.l.b16 %v1098
      %v1441 = vunpack.c.l.b16 %v1112
      %v1442 = vunpack.c.l.b16 %v1122
      %v1443 = vunpack.c.l.b16 %v1136
      %v1444 = vunpack.c.l.b16 %v1146
      %v1445 = vunpack.c.l.b16 %v1160
      %v1446 = vunpack.c.l.b16 %v1170
      %v1447 = vunpack.c.l.b16 %v1184
      %v1448 = vunpack.c.l.b16 %v1194
      %v1449 = vunpack.c.l.b16 %v1208
      %v1450 = vunpack.c.l.b16 %v1218
      %v1451 = vunpack.c.l.b16 %v1232
      %v1452 = vunpack.c.l.b16 %v1242
      %v1453 = vunpack.c.l.b16 %v1256
      %v1454 = vunpack.c.l.b16 %v1266
      %v1455 = vunpack.c.l.b16 %v1280
      %v1456 = vunpack.c.l.b16 %v1290
      %v1457 = vunpack.c.l.b16 %v1304
      %v1458 = vunpack.c.l.b16 %v1314
      %v1459 = vunpack.c.l.b16 %v1328
      %v1460 = vunpack.c.l.b16 %v1338
      %v1461 = vunpack.c.l.b16 %v1352
      %v1462 = vunpack.c.l.b16 %v1362
      %v1463 = vunpack.c.l.b16 %v1376
      %v1464 = vunpack.c.l.b16 %v1386
      %v1465 = vunpack.c.l.b16 %v1400
      %v1466 = vunpack.c.l.b16 %v1410
      %v1467 = vunpack.c.l.b16 %v1424
      %v1468 = vunpack.c.l.b16 %v1434
      %v1469 = vpack.c.b16 %v1438, %v1437
      %v1470 = vpack.c.b16 %v1440, %v1439
      %v1471 = vpack.c.b16 %v1442, %v1441
      %v1472 = vpack.c.b16 %v1444, %v1443
      %v1473 = vpack.c.b16 %v1446, %v1445
      %v1474 = vpack.c.b16 %v1448, %v1447
      %v1475 = vpack.c.b16 %v1450, %v1449
      %v1476 = vpack.c.b16 %v1452, %v1451
      %v1477 = vpack.c.b16 %v1454, %v1453
      %v1478 = vpack.c.b16 %v1456, %v1455
      %v1479 = vpack.c.b16 %v1458, %v1457
      %v1480 = vpack.c.b16 %v1460, %v1459
      %v1481 = vpack.c.b16 %v1462, %v1461
      %v1482 = vpack.c.b16 %v1464, %v1463
      %v1483 = vpack.c.b16 %v1466, %v1465
      %v1484 = vpack.c.b16 %v1468, %v1467
      %v1486 = vsel %vm456, %v1469, 0
      %v1489 = vsel %vm456, %v1470, 0
      %v1492 = vsel %vm456, %v1471, 0
      %v1495 = vsel %vm456, %v1472, 0
      %v1498 = vsel %vm456, %v1473, 0
      %v1501 = vsel %vm456, %v1474, 0
      %v1504 = vsel %vm456, %v1475, 0
      %v1507 = vsel %vm456, %v1476, 0
      %v1510 = vsel %vm456, %v1477, 0
      %v1513 = vsel %vm456, %v1478, 0
      %v1516 = vsel %vm456, %v1479, 0
      %v1519 = vsel %vm456, %v1480, 0
      %v1522 = vsel %vm456, %v1481, 0
      %v1525 = vsel %vm456, %v1482, 0
      %v1528 = vsel %vm456, %v1483, 0
      %v1531 = vsel %vm456, %v1484, 0
      %v1534 = vsel %vm505, %v1436, 0
      %1536 = vmatprep.subr.bf16.mxu0 0
      %1537 = vmatpush1.bf16.msra.mxu0 0
      %1538 = vmatprep.subr.bf16.mxu0 0
      %1539 = vmatpush1.bf16.msra.mxu0 0
      %1540 = vmatprep.subr.bf16.mxu0 0
      %1541 = vmatpush1.bf16.msra.mxu0 0
      %1542 = vmatprep.subr.bf16.mxu0 0
      %1543 = vmatpush1.bf16.msra.mxu0 0
      %1544 = vmatprep.subr.bf16.mxu0 0
      %1545 = vmatpush1.bf16.msra.mxu0 0
      %1546 = vmatprep.subr.bf16.mxu0 0
      %1547 = vmatpush1.bf16.msra.mxu0 0
      %1548 = vmatprep.subr.bf16.mxu0 0
      %1549 = vmatpush1.bf16.msra.mxu0 0
      %1550 = vmatprep.subr.bf16.mxu0 0
      %1551 = vmatpush1.bf16.msra.mxu0 %v1534
      %1552 = vmatprep.subr.bf16.mxu0 0
      %1553 = vmatpush2.bf16.msra.mxu0 0
      %1554 = vmatprep.subr.bf16.mxu0 0
      %1555 = vmatpush2.bf16.msra.mxu0 0
      %1556 = vmatprep.subr.bf16.mxu0 0
      %1557 = vmatpush2.bf16.msra.mxu0 0
      %1558 = vmatprep.subr.bf16.mxu0 0
      %1559 = vmatpush2.bf16.msra.mxu0 0
      %1560 = vmatprep.subr.bf16.mxu0 0
      %1561 = vmatpush2.bf16.msra.mxu0 0
      %1562 = vmatprep.subr.bf16.mxu0 0
      %1563 = vmatpush2.bf16.msra.mxu0 0
      %1564 = vmatprep.subr.bf16.mxu0 0
      %1565 = vmatpush2.bf16.msra.mxu0 0
      %1566 = vmatprep.subr.bf16.mxu0 0
      %1567 = vmatpush2.bf16.msra.mxu0 0
      %1568 = vmatprep.mubr.bf16.mxu0 0
      %1569 = vmatmul.mubr.bf16.gmra.mxu0 %v1486
      %v1570 = vpop.f32.mrf.mxu0
      %v1571 = vadd.f32 0.0, %v1570
      %v1572 = vpop.f32.mrf.mxu0
      %v1573 = vpop.f32.mrf.mxu0
      %v1574 = vadd.f32 0.0, %v1573
      %v1575 = vpop.f32.mrf.mxu0
      %1576 = vmatprep.mubr.bf16.mxu0 0
      %1577 = vmatmul.mubr.bf16.gmra.mxu0 %v1489
      %v1578 = vpop.f32.mrf.mxu0
      %v1579 = vadd.f32 0.0, %v1578
      %v1580 = vpop.f32.mrf.mxu0
      %v1581 = vpop.f32.mrf.mxu0
      %v1582 = vadd.f32 0.0, %v1581
      %v1583 = vpop.f32.mrf.mxu0
      %1584 = vmatprep.mubr.bf16.mxu0 0
      %1585 = vmatmul.mubr.bf16.gmra.mxu0 %v1492
      %v1586 = vpop.f32.mrf.mxu0
      %v1587 = vadd.f32 0.0, %v1586
      %v1588 = vpop.f32.mrf.mxu0
      %v1589 = vpop.f32.mrf.mxu0
      %v1590 = vadd.f32 0.0, %v1589
      %v1591 = vpop.f32.mrf.mxu0
      %1592 = vmatprep.mubr.bf16.mxu0 0
      %1593 = vmatmul.mubr.bf16.gmra.mxu0 %v1495
      %v1594 = vpop.f32.mrf.mxu0
      %v1595 = vadd.f32 0.0, %v1594
      %v1596 = vpop.f32.mrf.mxu0
      %v1597 = vpop.f32.mrf.mxu0
      %v1598 = vadd.f32 0.0, %v1597
      %v1599 = vpop.f32.mrf.mxu0
      %1600 = vmatprep.mubr.bf16.mxu0 0
      %1601 = vmatmul.mubr.bf16.gmra.mxu0 %v1498
      %v1602 = vpop.f32.mrf.mxu0
      %v1603 = vadd.f32 0.0, %v1602
      %v1604 = vpop.f32.mrf.mxu0
      %v1605 = vpop.f32.mrf.mxu0
      %v1606 = vadd.f32 0.0, %v1605
      %v1607 = vpop.f32.mrf.mxu0
      %1608 = vmatprep.mubr.bf16.mxu0 0
      %1609 = vmatmul.mubr.bf16.gmra.mxu0 %v1501
      %v1610 = vpop.f32.mrf.mxu0
      %v1611 = vadd.f32 0.0, %v1610
      %v1612 = vpop.f32.mrf.mxu0
      %v1613 = vpop.f32.mrf.mxu0
      %v1614 = vadd.f32 0.0, %v1613
      %v1615 = vpop.f32.mrf.mxu0
      %1616 = vmatprep.mubr.bf16.mxu0 0
      %1617 = vmatmul.mubr.bf16.gmra.mxu0 %v1504
      %v1618 = vpop.f32.mrf.mxu0
      %v1619 = vadd.f32 0.0, %v1618
      %v1620 = vpop.f32.mrf.mxu0
      %v1621 = vpop.f32.mrf.mxu0
      %v1622 = vadd.f32 0.0, %v1621
      %v1623 = vpop.f32.mrf.mxu0
      %1624 = vmatprep.mubr.bf16.mxu0 0
      %1625 = vmatmul.mubr.bf16.gmra.mxu0 %v1507
      %v1626 = vpop.f32.mrf.mxu0
      %v1627 = vadd.f32 0.0, %v1626
      %v1628 = vpop.f32.mrf.mxu0
      %v1629 = vpop.f32.mrf.mxu0
      %v1630 = vadd.f32 0.0, %v1629
      %v1631 = vpop.f32.mrf.mxu0
      %1632 = vmatprep.mubr.bf16.mxu0 0
      %1633 = vmatmul.mubr.bf16.gmra.mxu0 %v1510
      %v1634 = vpop.f32.mrf.mxu0
      %v1635 = vadd.f32 0.0, %v1634
      %v1636 = vpop.f32.mrf.mxu0
      %v1637 = vpop.f32.mrf.mxu0
      %v1638 = vadd.f32 0.0, %v1637
      %v1639 = vpop.f32.mrf.mxu0
      %1640 = vmatprep.mubr.bf16.mxu0 0
      %1641 = vmatmul.mubr.bf16.gmra.mxu0 %v1513
      %v1642 = vpop.f32.mrf.mxu0
      %v1643 = vadd.f32 0.0, %v1642
      %v1644 = vpop.f32.mrf.mxu0
      %v1645 = vpop.f32.mrf.mxu0
      %v1646 = vadd.f32 0.0, %v1645
      %v1647 = vpop.f32.mrf.mxu0
      %1648 = vmatprep.mubr.bf16.mxu0 0
      %1649 = vmatmul.mubr.bf16.gmra.mxu0 %v1516
      %v1650 = vpop.f32.mrf.mxu0
      %v1651 = vadd.f32 0.0, %v1650
      %v1652 = vpop.f32.mrf.mxu0
      %v1653 = vpop.f32.mrf.mxu0
      %v1654 = vadd.f32 0.0, %v1653
      %v1655 = vpop.f32.mrf.mxu0
      %1656 = vmatprep.mubr.bf16.mxu0 0
      %1657 = vmatmul.mubr.bf16.gmra.mxu0 %v1519
      %v1658 = vpop.f32.mrf.mxu0
      %v1659 = vadd.f32 0.0, %v1658
      %v1660 = vpop.f32.mrf.mxu0
      %v1661 = vpop.f32.mrf.mxu0
      %v1662 = vadd.f32 0.0, %v1661
      %v1663 = vpop.f32.mrf.mxu0
      %1664 = vmatprep.mubr.bf16.mxu0 0
      %1665 = vmatmul.mubr.bf16.gmra.mxu0 %v1522
      %v1666 = vpop.f32.mrf.mxu0
      %v1667 = vadd.f32 0.0, %v1666
      %v1668 = vpop.f32.mrf.mxu0
      %v1669 = vpop.f32.mrf.mxu0
      %v1670 = vadd.f32 0.0, %v1669
      %v1671 = vpop.f32.mrf.mxu0
      %1672 = vmatprep.mubr.bf16.mxu0 0
      %1673 = vmatmul.mubr.bf16.gmra.mxu0 %v1525
      %v1674 = vpop.f32.mrf.mxu0
      %v1675 = vadd.f32 0.0, %v1674
      %v1676 = vpop.f32.mrf.mxu0
      %v1677 = vpop.f32.mrf.mxu0
      %v1678 = vadd.f32 0.0, %v1677
      %v1679 = vpop.f32.mrf.mxu0
      %1680 = vmatprep.mubr.bf16.mxu0 0
      %1681 = vmatmul.mubr.bf16.gmra.mxu0 %v1528
      %v1682 = vpop.f32.mrf.mxu0
      %v1683 = vadd.f32 0.0, %v1682
      %v1684 = vpop.f32.mrf.mxu0
      %v1685 = vpop.f32.mrf.mxu0
      %v1686 = vadd.f32 0.0, %v1685
      %v1687 = vpop.f32.mrf.mxu0
      %1688 = vmatprep.mubr.bf16.mxu0 0
      %1689 = vmatmul.mubr.bf16.gmra.mxu0 %v1531
      %v1690 = vpop.f32.mrf.mxu0
      %v1691 = vadd.f32 0.0, %v1690
      %v1692 = vpop.f32.mrf.mxu0
      %v1693 = vpop.f32.mrf.mxu0
      %v1694 = vadd.f32 0.0, %v1693
      %v1695 = vpop.f32.mrf.mxu0
      %1696 = vdwg.mxu0
      %v1697 = vadd.f32 %v1016, %v1571
      %v1698 = vadd.f32 %v1017, %v1574
      %v1699 = vadd.f32 %v1018, %v1579
      %v1700 = vadd.f32 %v1019, %v1582
      %v1701 = vadd.f32 %v1020, %v1587
      %v1702 = vadd.f32 %v1021, %v1590
      %v1703 = vadd.f32 %v1022, %v1595
      %v1704 = vadd.f32 %v1023, %v1598
      %v1705 = vadd.f32 %v1024, %v1603
      %v1706 = vadd.f32 %v1025, %v1606
      %v1707 = vadd.f32 %v1026, %v1611
      %v1708 = vadd.f32 %v1027, %v1614
      %v1709 = vadd.f32 %v1028, %v1619
      %v1710 = vadd.f32 %v1029, %v1622
      %v1711 = vadd.f32 %v1030, %v1627
      %v1712 = vadd.f32 %v1031, %v1630
      %v1713 = vadd.f32 %v1032, %v1635
      %v1714 = vadd.f32 %v1033, %v1638
      %v1715 = vadd.f32 %v1034, %v1643
      %v1716 = vadd.f32 %v1035, %v1646
      %v1717 = vadd.f32 %v1036, %v1651
      %v1718 = vadd.f32 %v1037, %v1654
      %v1719 = vadd.f32 %v1038, %v1659
      %v1720 = vadd.f32 %v1039, %v1662
      %v1721 = vadd.f32 %v1040, %v1667
      %v1722 = vadd.f32 %v1041, %v1670
      %v1723 = vadd.f32 %v1042, %v1675
      %v1724 = vadd.f32 %v1043, %v1678
      %v1725 = vadd.f32 %v1044, %v1683
      %v1726 = vadd.f32 %v1045, %v1686
      %v1727 = vadd.f32 %v1046, %v1691
      %v1728 = vadd.f32 %v1047, %v1694
      %v1730 = vshrl.u32 %v367, 16
      %v1732 = vrot.slane %v1730, 4
      %v1733 = vshll.u32 %v367, 16
      %v1735 = vrot.slane %v1733, 5
      %v1736 = vor.u32 %v1732, %v1735
      %v1737 = vrot.slane %v1736, 4
      %v1739 = vshll.u32 %v368, 16
      %v1741 = vrot.slane %v1739, 5
      %v1742 = vsel %vm1050, %v1737, %v1741
      %v1743 = vshrl.u32 %v368, 16
      %v1745 = vrot.slane %v1743, 4
      %v1746 = vor.u32 %v1745, %v1741
      %v1747 = vrot.slane %v1746, 4
      %v1749 = vshll.u32 %v369, 16
      %v1751 = vrot.slane %v1749, 5
      %v1752 = vsel %vm1050, %v1747, %v1751
      %s1753 = scalar_lea.vmem %s2, 8
      %v1754 = vld [vmem:[%s1753] sm:$0x3]
      %v1755 = vunpack.c.l.b16 %v1742
      %v1756 = vunpack.c.l.b16 %v1752
      %v1757 = vpack.c.b16 %v1756, %v1755
      %v1759 = vsel %vm456, %v1757, 0
      %v1762 = vsel %vm505, %v1754, 0
      %1764 = vmatprep.subr.bf16.mxu0 0
      %1765 = vmatpush1.bf16.msra.mxu0 0
      %1766 = vmatprep.subr.bf16.mxu0 0
      %1767 = vmatpush1.bf16.msra.mxu0 0
      %1768 = vmatprep.subr.bf16.mxu0 0
      %1769 = vmatpush1.bf16.msra.mxu0 0
      %1770 = vmatprep.subr.bf16.mxu0 0
      %1771 = vmatpush1.bf16.msra.mxu0 0
      %1772 = vmatprep.subr.bf16.mxu0 0
      %1773 = vmatpush1.bf16.msra.mxu0 0
      %1774 = vmatprep.subr.bf16.mxu0 0
      %1775 = vmatpush1.bf16.msra.mxu0 0
      %1776 = vmatprep.subr.bf16.mxu0 0
      %1777 = vmatpush1.bf16.msra.mxu0 0
      %1778 = vmatprep.subr.bf16.mxu0 0
      %1779 = vmatpush1.bf16.msra.mxu0 %v1762
      %1780 = vmatprep.subr.bf16.mxu0 0
      %1781 = vmatpush2.bf16.msra.mxu0 0
      %1782 = vmatprep.subr.bf16.mxu0 0
      %1783 = vmatpush2.bf16.msra.mxu0 0
      %1784 = vmatprep.subr.bf16.mxu0 0
      %1785 = vmatpush2.bf16.msra.mxu0 0
      %1786 = vmatprep.subr.bf16.mxu0 0
      %1787 = vmatpush2.bf16.msra.mxu0 0
      %1788 = vmatprep.subr.bf16.mxu0 0
      %1789 = vmatpush2.bf16.msra.mxu0 0
      %1790 = vmatprep.subr.bf16.mxu0 0
      %1791 = vmatpush2.bf16.msra.mxu0 0
      %1792 = vmatprep.subr.bf16.mxu0 0
      %1793 = vmatpush2.bf16.msra.mxu0 0
      %1794 = vmatprep.subr.bf16.mxu0 0
      %1795 = vmatpush2.bf16.msra.mxu0 0
      %1796 = vmatprep.mubr.bf16.mxu0 0
      %1797 = vmatmul.mubr.bf16.gmra.mxu0 %v1489
      %v1798 = vpop.f32.mrf.mxu0
      %v1799 = vadd.f32 0.0, %v1798
      %v1800 = vpop.f32.mrf.mxu0
      %v1801 = vpop.f32.mrf.mxu0
      %v1802 = vadd.f32 0.0, %v1801
      %v1803 = vpop.f32.mrf.mxu0
      %1804 = vmatprep.mubr.bf16.mxu0 0
      %1805 = vmatmul.mubr.bf16.gmra.mxu0 %v1492
      %v1806 = vpop.f32.mrf.mxu0
      %v1807 = vadd.f32 0.0, %v1806
      %v1808 = vpop.f32.mrf.mxu0
      %v1809 = vpop.f32.mrf.mxu0
      %v1810 = vadd.f32 0.0, %v1809
      %v1811 = vpop.f32.mrf.mxu0
      %1812 = vmatprep.mubr.bf16.mxu0 0
      %1813 = vmatmul.mubr.bf16.gmra.mxu0 %v1495
      %v1814 = vpop.f32.mrf.mxu0
      %v1815 = vadd.f32 0.0, %v1814
      %v1816 = vpop.f32.mrf.mxu0
      %v1817 = vpop.f32.mrf.mxu0
      %v1818 = vadd.f32 0.0, %v1817
      %v1819 = vpop.f32.mrf.mxu0
      %1820 = vmatprep.mubr.bf16.mxu0 0
      %1821 = vmatmul.mubr.bf16.gmra.mxu0 %v1498
      %v1822 = vpop.f32.mrf.mxu0
      %v1823 = vadd.f32 0.0, %v1822
      %v1824 = vpop.f32.mrf.mxu0
      %v1825 = vpop.f32.mrf.mxu0
      %v1826 = vadd.f32 0.0, %v1825
      %v1827 = vpop.f32.mrf.mxu0
      %1828 = vmatprep.mubr.bf16.mxu0 0
      %1829 = vmatmul.mubr.bf16.gmra.mxu0 %v1501
      %v1830 = vpop.f32.mrf.mxu0
      %v1831 = vadd.f32 0.0, %v1830
      %v1832 = vpop.f32.mrf.mxu0
      %v1833 = vpop.f32.mrf.mxu0
      %v1834 = vadd.f32 0.0, %v1833
      %v1835 = vpop.f32.mrf.mxu0
      %1836 = vmatprep.mubr.bf16.mxu0 0
      %1837 = vmatmul.mubr.bf16.gmra.mxu0 %v1504
      %v1838 = vpop.f32.mrf.mxu0
      %v1839 = vadd.f32 0.0, %v1838
      %v1840 = vpop.f32.mrf.mxu0
      %v1841 = vpop.f32.mrf.mxu0
      %v1842 = vadd.f32 0.0, %v1841
      %v1843 = vpop.f32.mrf.mxu0
      %1844 = vmatprep.mubr.bf16.mxu0 0
      %1845 = vmatmul.mubr.bf16.gmra.mxu0 %v1507
      %v1846 = vpop.f32.mrf.mxu0
      %v1847 = vadd.f32 0.0, %v1846
      %v1848 = vpop.f32.mrf.mxu0
      %v1849 = vpop.f32.mrf.mxu0
      %v1850 = vadd.f32 0.0, %v1849
      %v1851 = vpop.f32.mrf.mxu0
      %1852 = vmatprep.mubr.bf16.mxu0 0
      %1853 = vmatmul.mubr.bf16.gmra.mxu0 %v1510
      %v1854 = vpop.f32.mrf.mxu0
      %v1855 = vadd.f32 0.0, %v1854
      %v1856 = vpop.f32.mrf.mxu0
      %v1857 = vpop.f32.mrf.mxu0
      %v1858 = vadd.f32 0.0, %v1857
      %v1859 = vpop.f32.mrf.mxu0
      %1860 = vmatprep.mubr.bf16.mxu0 0
      %1861 = vmatmul.mubr.bf16.gmra.mxu0 %v1513
      %v1862 = vpop.f32.mrf.mxu0
      %v1863 = vadd.f32 0.0, %v1862
      %v1864 = vpop.f32.mrf.mxu0
      %v1865 = vpop.f32.mrf.mxu0
      %v1866 = vadd.f32 0.0, %v1865
      %v1867 = vpop.f32.mrf.mxu0
      %1868 = vmatprep.mubr.bf16.mxu0 0
      %1869 = vmatmul.mubr.bf16.gmra.mxu0 %v1516
      %v1870 = vpop.f32.mrf.mxu0
      %v1871 = vadd.f32 0.0, %v1870
      %v1872 = vpop.f32.mrf.mxu0
      %v1873 = vpop.f32.mrf.mxu0
      %v1874 = vadd.f32 0.0, %v1873
      %v1875 = vpop.f32.mrf.mxu0
      %1876 = vmatprep.mubr.bf16.mxu0 0
      %1877 = vmatmul.mubr.bf16.gmra.mxu0 %v1519
      %v1878 = vpop.f32.mrf.mxu0
      %v1879 = vadd.f32 0.0, %v1878
      %v1880 = vpop.f32.mrf.mxu0
      %v1881 = vpop.f32.mrf.mxu0
      %v1882 = vadd.f32 0.0, %v1881
      %v1883 = vpop.f32.mrf.mxu0
      %1884 = vmatprep.mubr.bf16.mxu0 0
      %1885 = vmatmul.mubr.bf16.gmra.mxu0 %v1522
      %v1886 = vpop.f32.mrf.mxu0
      %v1887 = vadd.f32 0.0, %v1886
      %v1888 = vpop.f32.mrf.mxu0
      %v1889 = vpop.f32.mrf.mxu0
      %v1890 = vadd.f32 0.0, %v1889
      %v1891 = vpop.f32.mrf.mxu0
      %1892 = vmatprep.mubr.bf16.mxu0 0
      %1893 = vmatmul.mubr.bf16.gmra.mxu0 %v1525
      %v1894 = vpop.f32.mrf.mxu0
      %v1895 = vadd.f32 0.0, %v1894
      %v1896 = vpop.f32.mrf.mxu0
      %v1897 = vpop.f32.mrf.mxu0
      %v1898 = vadd.f32 0.0, %v1897
      %v1899 = vpop.f32.mrf.mxu0
      %1900 = vmatprep.mubr.bf16.mxu0 0
      %1901 = vmatmul.mubr.bf16.gmra.mxu0 %v1528
      %v1902 = vpop.f32.mrf.mxu0
      %v1903 = vadd.f32 0.0, %v1902
      %v1904 = vpop.f32.mrf.mxu0
      %v1905 = vpop.f32.mrf.mxu0
      %v1906 = vadd.f32 0.0, %v1905
      %v1907 = vpop.f32.mrf.mxu0
      %1908 = vmatprep.mubr.bf16.mxu0 0
      %1909 = vmatmul.mubr.bf16.gmra.mxu0 %v1531
      %v1910 = vpop.f32.mrf.mxu0
      %v1911 = vadd.f32 0.0, %v1910
      %v1912 = vpop.f32.mrf.mxu0
      %v1913 = vpop.f32.mrf.mxu0
      %v1914 = vadd.f32 0.0, %v1913
      %v1915 = vpop.f32.mrf.mxu0
      %1916 = vmatprep.mubr.bf16.mxu0 0
      %1917 = vmatmul.mubr.bf16.gmra.mxu0 %v1759
      %v1918 = vpop.f32.mrf.mxu0
      %v1919 = vadd.f32 0.0, %v1918
      %v1920 = vpop.f32.mrf.mxu0
      %v1921 = vpop.f32.mrf.mxu0
      %v1922 = vadd.f32 0.0, %v1921
      %v1923 = vpop.f32.mrf.mxu0
      %1924 = vdwg.mxu0
      %v1925 = vadd.f32 %v1697, %v1799
      %v1926 = vadd.f32 %v1698, %v1802
      %v1927 = vadd.f32 %v1699, %v1807
      %v1928 = vadd.f32 %v1700, %v1810
      %v1929 = vadd.f32 %v1701, %v1815
      %v1930 = vadd.f32 %v1702, %v1818
      %v1931 = vadd.f32 %v1703, %v1823
      %v1932 = vadd.f32 %v1704, %v1826
      %v1933 = vadd.f32 %v1705, %v1831
      %v1934 = vadd.f32 %v1706, %v1834
      %v1935 = vadd.f32 %v1707, %v1839
      %v1936 = vadd.f32 %v1708, %v1842
      %v1937 = vadd.f32 %v1709, %v1847
      %v1938 = vadd.f32 %v1710, %v1850
      %v1939 = vadd.f32 %v1711, %v1855
      %v1940 = vadd.f32 %v1712, %v1858
      %v1941 = vadd.f32 %v1713, %v1863
      %v1942 = vadd.f32 %v1714, %v1866
      %v1943 = vadd.f32 %v1715, %v1871
      %v1944 = vadd.f32 %v1716, %v1874
      %v1945 = vadd.f32 %v1717, %v1879
      %v1946 = vadd.f32 %v1718, %v1882
      %v1947 = vadd.f32 %v1719, %v1887
      %v1948 = vadd.f32 %v1720, %v1890
      %v1949 = vadd.f32 %v1721, %v1895
      %v1950 = vadd.f32 %v1722, %v1898
      %v1951 = vadd.f32 %v1723, %v1903
      %v1952 = vadd.f32 %v1724, %v1906
      %v1953 = vadd.f32 %v1725, %v1911
      %v1954 = vadd.f32 %v1726, %v1914
      %v1955 = vadd.f32 %v1727, %v1919
      %v1956 = vadd.f32 %v1728, %v1922
      %v1958 = vshrl.u32 %v370, 16
      %v1960 = vrot.slane %v1958, 4
      %v1961 = vshll.u32 %v370, 16
      %v1963 = vrot.slane %v1961, 5
      %v1964 = vor.u32 %v1960, %v1963
      %v1965 = vrot.slane %v1964, 4
      %v1967 = vshll.u32 %v371, 16
      %v1969 = vrot.slane %v1967, 5
      %v1970 = vsel %vm1050, %v1965, %v1969
      %v1971 = vshrl.u32 %v371, 16
      %v1973 = vrot.slane %v1971, 4
      %v1974 = vor.u32 %v1973, %v1969
      %v1975 = vrot.slane %v1974, 4
      %v1977 = vshll.u32 %v372, 16
      %v1979 = vrot.slane %v1977, 5
      %v1980 = vsel %vm1050, %v1975, %v1979
      %s1981 = scalar_lea.vmem %s2, 10
      %v1982 = vld [vmem:[%s1981] sm:$0x3]
      %v1983 = vunpack.c.l.b16 %v1970
      %v1984 = vunpack.c.l.b16 %v1980
      %v1985 = vpack.c.b16 %v1984, %v1983
      %v1987 = vsel %vm456, %v1985, 0
      %v1990 = vsel %vm505, %v1982, 0
      %1992 = vmatprep.subr.bf16.mxu0 0
      %1993 = vmatpush1.bf16.msra.mxu0 0
      %1994 = vmatprep.subr.bf16.mxu0 0
      %1995 = vmatpush1.bf16.msra.mxu0 0
      %1996 = vmatprep.subr.bf16.mxu0 0
      %1997 = vmatpush1.bf16.msra.mxu0 0
      %1998 = vmatprep.subr.bf16.mxu0 0
      %1999 = vmatpush1.bf16.msra.mxu0 0
      %2000 = vmatprep.subr.bf16.mxu0 0
      %2001 = vmatpush1.bf16.msra.mxu0 0
      %2002 = vmatprep.subr.bf16.mxu0 0
      %2003 = vmatpush1.bf16.msra.mxu0 0
      %2004 = vmatprep.subr.bf16.mxu0 0
      %2005 = vmatpush1.bf16.msra.mxu0 0
      %2006 = vmatprep.subr.bf16.mxu0 0
      %2007 = vmatpush1.bf16.msra.mxu0 %v1990
      %2008 = vmatprep.subr.bf16.mxu0 0
      %2009 = vmatpush2.bf16.msra.mxu0 0
      %2010 = vmatprep.subr.bf16.mxu0 0
      %2011 = vmatpush2.bf16.msra.mxu0 0
      %2012 = vmatprep.subr.bf16.mxu0 0
      %2013 = vmatpush2.bf16.msra.mxu0 0
      %2014 = vmatprep.subr.bf16.mxu0 0
      %2015 = vmatpush2.bf16.msra.mxu0 0
      %2016 = vmatprep.subr.bf16.mxu0 0
      %2017 = vmatpush2.bf16.msra.mxu0 0
      %2018 = vmatprep.subr.bf16.mxu0 0
      %2019 = vmatpush2.bf16.msra.mxu0 0
      %2020 = vmatprep.subr.bf16.mxu0 0
      %2021 = vmatpush2.bf16.msra.mxu0 0
      %2022 = vmatprep.subr.bf16.mxu0 0
      %2023 = vmatpush2.bf16.msra.mxu0 0
      %2024 = vmatprep.mubr.bf16.mxu0 0
      %2025 = vmatmul.mubr.bf16.gmra.mxu0 %v1492
      %v2026 = vpop.f32.mrf.mxu0
      %v2027 = vadd.f32 0.0, %v2026
      %v2028 = vpop.f32.mrf.mxu0
      %v2029 = vpop.f32.mrf.mxu0
      %v2030 = vadd.f32 0.0, %v2029
      %v2031 = vpop.f32.mrf.mxu0
      %2032 = vmatprep.mubr.bf16.mxu0 0
      %2033 = vmatmul.mubr.bf16.gmra.mxu0 %v1495
      %v2034 = vpop.f32.mrf.mxu0
      %v2035 = vadd.f32 0.0, %v2034
      %v2036 = vpop.f32.mrf.mxu0
      %v2037 = vpop.f32.mrf.mxu0
      %v2038 = vadd.f32 0.0, %v2037
      %v2039 = vpop.f32.mrf.mxu0
      %2040 = vmatprep.mubr.bf16.mxu0 0
      %2041 = vmatmul.mubr.bf16.gmra.mxu0 %v1498
      %v2042 = vpop.f32.mrf.mxu0
      %v2043 = vadd.f32 0.0, %v2042
      %v2044 = vpop.f32.mrf.mxu0
      %v2045 = vpop.f32.mrf.mxu0
      %v2046 = vadd.f32 0.0, %v2045
      %v2047 = vpop.f32.mrf.mxu0
      %2048 = vmatprep.mubr.bf16.mxu0 0
      %2049 = vmatmul.mubr.bf16.gmra.mxu0 %v1501
      %v2050 = vpop.f32.mrf.mxu0
      %v2051 = vadd.f32 0.0, %v2050
      %v2052 = vpop.f32.mrf.mxu0
      %v2053 = vpop.f32.mrf.mxu0
      %v2054 = vadd.f32 0.0, %v2053
      %v2055 = vpop.f32.mrf.mxu0
      %2056 = vmatprep.mubr.bf16.mxu0 0
      %2057 = vmatmul.mubr.bf16.gmra.mxu0 %v1504
      %v2058 = vpop.f32.mrf.mxu0
      %v2059 = vadd.f32 0.0, %v2058
      %v2060 = vpop.f32.mrf.mxu0
      %v2061 = vpop.f32.mrf.mxu0
      %v2062 = vadd.f32 0.0, %v2061
      %v2063 = vpop.f32.mrf.mxu0
      %2064 = vmatprep.mubr.bf16.mxu0 0
      %2065 = vmatmul.mubr.bf16.gmra.mxu0 %v1507
      %v2066 = vpop.f32.mrf.mxu0
      %v2067 = vadd.f32 0.0, %v2066
      %v2068 = vpop.f32.mrf.mxu0
      %v2069 = vpop.f32.mrf.mxu0
      %v2070 = vadd.f32 0.0, %v2069
      %v2071 = vpop.f32.mrf.mxu0
      %2072 = vmatprep.mubr.bf16.mxu0 0
      %2073 = vmatmul.mubr.bf16.gmra.mxu0 %v1510
      %v2074 = vpop.f32.mrf.mxu0
      %v2075 = vadd.f32 0.0, %v2074
      %v2076 = vpop.f32.mrf.mxu0
      %v2077 = vpop.f32.mrf.mxu0
      %v2078 = vadd.f32 0.0, %v2077
      %v2079 = vpop.f32.mrf.mxu0
      %2080 = vmatprep.mubr.bf16.mxu0 0
      %2081 = vmatmul.mubr.bf16.gmra.mxu0 %v1513
      %v2082 = vpop.f32.mrf.mxu0
      %v2083 = vadd.f32 0.0, %v2082
      %v2084 = vpop.f32.mrf.mxu0
      %v2085 = vpop.f32.mrf.mxu0
      %v2086 = vadd.f32 0.0, %v2085
      %v2087 = vpop.f32.mrf.mxu0
      %2088 = vmatprep.mubr.bf16.mxu0 0
      %2089 = vmatmul.mubr.bf16.gmra.mxu0 %v1516
      %v2090 = vpop.f32.mrf.mxu0
      %v2091 = vadd.f32 0.0, %v2090
      %v2092 = vpop.f32.mrf.mxu0
      %v2093 = vpop.f32.mrf.mxu0
      %v2094 = vadd.f32 0.0, %v2093
      %v2095 = vpop.f32.mrf.mxu0
      %2096 = vmatprep.mubr.bf16.mxu0 0
      %2097 = vmatmul.mubr.bf16.gmra.mxu0 %v1519
      %v2098 = vpop.f32.mrf.mxu0
      %v2099 = vadd.f32 0.0, %v2098
      %v2100 = vpop.f32.mrf.mxu0
      %v2101 = vpop.f32.mrf.mxu0
      %v2102 = vadd.f32 0.0, %v2101
      %v2103 = vpop.f32.mrf.mxu0
      %2104 = vmatprep.mubr.bf16.mxu0 0
      %2105 = vmatmul.mubr.bf16.gmra.mxu0 %v1522
      %v2106 = vpop.f32.mrf.mxu0
      %v2107 = vadd.f32 0.0, %v2106
      %v2108 = vpop.f32.mrf.mxu0
      %v2109 = vpop.f32.mrf.mxu0
      %v2110 = vadd.f32 0.0, %v2109
      %v2111 = vpop.f32.mrf.mxu0
      %2112 = vmatprep.mubr.bf16.mxu0 0
      %2113 = vmatmul.mubr.bf16.gmra.mxu0 %v1525
      %v2114 = vpop.f32.mrf.mxu0
      %v2115 = vadd.f32 0.0, %v2114
      %v2116 = vpop.f32.mrf.mxu0
      %v2117 = vpop.f32.mrf.mxu0
      %v2118 = vadd.f32 0.0, %v2117
      %v2119 = vpop.f32.mrf.mxu0
      %2120 = vmatprep.mubr.bf16.mxu0 0
      %2121 = vmatmul.mubr.bf16.gmra.mxu0 %v1528
      %v2122 = vpop.f32.mrf.mxu0
      %v2123 = vadd.f32 0.0, %v2122
      %v2124 = vpop.f32.mrf.mxu0
      %v2125 = vpop.f32.mrf.mxu0
      %v2126 = vadd.f32 0.0, %v2125
      %v2127 = vpop.f32.mrf.mxu0
      %2128 = vmatprep.mubr.bf16.mxu0 0
      %2129 = vmatmul.mubr.bf16.gmra.mxu0 %v1531
      %v2130 = vpop.f32.mrf.mxu0
      %v2131 = vadd.f32 0.0, %v2130
      %v2132 = vpop.f32.mrf.mxu0
      %v2133 = vpop.f32.mrf.mxu0
      %v2134 = vadd.f32 0.0, %v2133
      %v2135 = vpop.f32.mrf.mxu0
      %2136 = vmatprep.mubr.bf16.mxu0 0
      %2137 = vmatmul.mubr.bf16.gmra.mxu0 %v1759
      %v2138 = vpop.f32.mrf.mxu0
      %v2139 = vadd.f32 0.0, %v2138
      %v2140 = vpop.f32.mrf.mxu0
      %v2141 = vpop.f32.mrf.mxu0
      %v2142 = vadd.f32 0.0, %v2141
      %v2143 = vpop.f32.mrf.mxu0
      %2144 = vmatprep.mubr.bf16.mxu0 0
      %2145 = vmatmul.mubr.bf16.gmra.mxu0 %v1987
      %v2146 = vpop.f32.mrf.mxu0
      %v2147 = vadd.f32 0.0, %v2146
      %v2148 = vpop.f32.mrf.mxu0
      %v2149 = vpop.f32.mrf.mxu0
      %v2150 = vadd.f32 0.0, %v2149
      %v2151 = vpop.f32.mrf.mxu0
      %2152 = vdwg.mxu0
      %v2153 = vadd.f32 %v1925, %v2027
      %v2154 = vadd.f32 %v1926, %v2030
      %v2155 = vadd.f32 %v1927, %v2035
      %v2156 = vadd.f32 %v1928, %v2038
      %v2157 = vadd.f32 %v1929, %v2043
      %v2158 = vadd.f32 %v1930, %v2046
      %v2159 = vadd.f32 %v1931, %v2051
      %v2160 = vadd.f32 %v1932, %v2054
      %v2161 = vadd.f32 %v1933, %v2059
      %v2162 = vadd.f32 %v1934, %v2062
      %v2163 = vadd.f32 %v1935, %v2067
      %v2164 = vadd.f32 %v1936, %v2070
      %v2165 = vadd.f32 %v1937, %v2075
      %v2166 = vadd.f32 %v1938, %v2078
      %v2167 = vadd.f32 %v1939, %v2083
      %v2168 = vadd.f32 %v1940, %v2086
      %v2169 = vadd.f32 %v1941, %v2091
      %v2170 = vadd.f32 %v1942, %v2094
      %v2171 = vadd.f32 %v1943, %v2099
      %v2172 = vadd.f32 %v1944, %v2102
      %v2173 = vadd.f32 %v1945, %v2107
      %v2174 = vadd.f32 %v1946, %v2110
      %v2175 = vadd.f32 %v1947, %v2115
      %v2176 = vadd.f32 %v1948, %v2118
      %v2177 = vadd.f32 %v1949, %v2123
      %v2178 = vadd.f32 %v1950, %v2126
      %v2179 = vadd.f32 %v1951, %v2131
      %v2180 = vadd.f32 %v1952, %v2134
      %v2181 = vadd.f32 %v1953, %v2139
      %v2182 = vadd.f32 %v1954, %v2142
      %v2183 = vadd.f32 %v1955, %v2147
      %v2184 = vadd.f32 %v1956, %v2150
      %vm2201 = vcmask 1042432
      %vm2202 = vcmask 1046532
      %vm2203 = vmor %vm2201, %vm2202
      %v2204 = vrot.slane %v319, 5
      %v2205 = vrot.slane %v2204, 4
      %v2206 = vrot.slane %v320, 5
      %v2207 = vsel %vm2203, %v2205, %v2206
      %v2208 = vrot.slane %v2206, 4
      %v2209 = vrot.slane %v321, 5
      %v2210 = vsel %vm2203, %v2208, %v2209
      %v2211 = vrot.slane %v322, 5
      %v2212 = vrot.slane %v2211, 4
      %v2213 = vrot.slane %v323, 5
      %v2214 = vsel %vm2203, %v2212, %v2213
      %v2215 = vrot.slane %v2213, 4
      %v2216 = vrot.slane %v324, 5
      %v2217 = vsel %vm2203, %v2215, %v2216
      %v2218 = vrot.slane %v325, 5
      %v2219 = vrot.slane %v2218, 4
      %v2220 = vrot.slane %v326, 5
      %v2221 = vsel %vm2203, %v2219, %v2220
      %v2222 = vrot.slane %v2220, 4
      %v2223 = vrot.slane %v327, 5
      %v2224 = vsel %vm2203, %v2222, %v2223
      %v2225 = vrot.slane %v328, 5
      %v2226 = vrot.slane %v2225, 4
      %v2227 = vrot.slane %v329, 5
      %v2228 = vsel %vm2203, %v2226, %v2227
      %v2229 = vrot.slane %v2227, 4
      %v2230 = vrot.slane %v330, 5
      %v2231 = vsel %vm2203, %v2229, %v2230
      %v2232 = vrot.slane %v331, 5
      %v2233 = vrot.slane %v2232, 4
      %v2234 = vrot.slane %v332, 5
      %v2235 = vsel %vm2203, %v2233, %v2234
      %v2236 = vrot.slane %v2234, 4
      %v2237 = vrot.slane %v333, 5
      %v2238 = vsel %vm2203, %v2236, %v2237
      %v2239 = vrot.slane %v334, 5
      %v2240 = vrot.slane %v2239, 4
      %v2241 = vrot.slane %v335, 5
      %v2242 = vsel %vm2203, %v2240, %v2241
      %v2243 = vrot.slane %v2241, 4
      %v2244 = vrot.slane %v336, 5
      %v2245 = vsel %vm2203, %v2243, %v2244
      %v2246 = vrot.slane %v337, 5
      %v2247 = vrot.slane %v2246, 4
      %v2248 = vrot.slane %v338, 5
      %v2249 = vsel %vm2203, %v2247, %v2248
      %v2250 = vrot.slane %v2248, 4
      %v2251 = vrot.slane %v339, 5
      %v2252 = vsel %vm2203, %v2250, %v2251
      %v2253 = vrot.slane %v340, 5
      %v2254 = vrot.slane %v2253, 4
      %v2255 = vrot.slane %v341, 5
      %v2256 = vsel %vm2203, %v2254, %v2255
      %v2257 = vrot.slane %v2255, 4
      %v2258 = vrot.slane %v342, 5
      %v2259 = vsel %vm2203, %v2257, %v2258
      %v2260 = vrot.slane %v343, 5
      %v2261 = vrot.slane %v2260, 4
      %v2262 = vrot.slane %v344, 5
      %v2263 = vsel %vm2203, %v2261, %v2262
      %v2264 = vrot.slane %v2262, 4
      %v2265 = vrot.slane %v345, 5
      %v2266 = vsel %vm2203, %v2264, %v2265
      %v2267 = vrot.slane %v346, 5
      %v2268 = vrot.slane %v2267, 4
      %v2269 = vrot.slane %v347, 5
      %v2270 = vsel %vm2203, %v2268, %v2269
      %v2271 = vrot.slane %v2269, 4
      %v2272 = vrot.slane %v348, 5
      %v2273 = vsel %vm2203, %v2271, %v2272
      %v2274 = vrot.slane %v349, 5
      %v2275 = vrot.slane %v2274, 4
      %v2276 = vrot.slane %v350, 5
      %v2277 = vsel %vm2203, %v2275, %v2276
      %v2278 = vrot.slane %v2276, 4
      %v2279 = vrot.slane %v351, 5
      %v2280 = vsel %vm2203, %v2278, %v2279
      %v2281 = vrot.slane %v352, 5
      %v2282 = vrot.slane %v2281, 4
      %v2283 = vrot.slane %v353, 5
      %v2284 = vsel %vm2203, %v2282, %v2283
      %v2285 = vrot.slane %v2283, 4
      %v2286 = vrot.slane %v354, 5
      %v2287 = vsel %vm2203, %v2285, %v2286
      %v2288 = vrot.slane %v355, 5
      %v2289 = vrot.slane %v2288, 4
      %v2290 = vrot.slane %v356, 5
      %v2291 = vsel %vm2203, %v2289, %v2290
      %v2292 = vrot.slane %v2290, 4
      %v2293 = vrot.slane %v357, 5
      %v2294 = vsel %vm2203, %v2292, %v2293
      %v2295 = vrot.slane %v358, 5
      %v2296 = vrot.slane %v2295, 4
      %v2297 = vrot.slane %v359, 5
      %v2298 = vsel %vm2203, %v2296, %v2297
      %v2299 = vrot.slane %v2297, 4
      %v2300 = vrot.slane %v360, 5
      %v2301 = vsel %vm2203, %v2299, %v2300
      %v2302 = vrot.slane %v361, 5
      %v2303 = vrot.slane %v2302, 4
      %v2304 = vrot.slane %v362, 5
      %v2305 = vsel %vm2203, %v2303, %v2304
      %v2306 = vrot.slane %v2304, 4
      %v2307 = vrot.slane %v363, 5
      %v2308 = vsel %vm2203, %v2306, %v2307
      %v2309 = vrot.slane %v364, 5
      %v2310 = vrot.slane %v2309, 4
      %v2311 = vrot.slane %v365, 5
      %v2312 = vsel %vm2203, %v2310, %v2311
      %v2313 = vrot.slane %v2311, 4
      %v2314 = vrot.slane %v366, 5
      %v2315 = vsel %vm2203, %v2313, %v2314
      %s2316 = scalar_lea.vmem %s2, 12
      %v2317 = vld [vmem:[%s2316] sm:$0x3]
      %v2318 = vunpack.c.l.b16 %v2207
      %v2319 = vunpack.c.l.b16 %v2210
      %v2320 = vunpack.c.l.b16 %v2214
      %v2321 = vunpack.c.l.b16 %v2217
      %v2322 = vunpack.c.l.b16 %v2221
      %v2323 = vunpack.c.l.b16 %v2224
      %v2324 = vunpack.c.l.b16 %v2228
      %v2325 = vunpack.c.l.b16 %v2231
      %v2326 = vunpack.c.l.b16 %v2235
      %v2327 = vunpack.c.l.b16 %v2238
      %v2328 = vunpack.c.l.b16 %v2242
      %v2329 = vunpack.c.l.b16 %v2245
      %v2330 = vunpack.c.l.b16 %v2249
      %v2331 = vunpack.c.l.b16 %v2252
      %v2332 = vunpack.c.l.b16 %v2256
      %v2333 = vunpack.c.l.b16 %v2259
      %v2334 = vunpack.c.l.b16 %v2263
      %v2335 = vunpack.c.l.b16 %v2266
      %v2336 = vunpack.c.l.b16 %v2270
      %v2337 = vunpack.c.l.b16 %v2273
      %v2338 = vunpack.c.l.b16 %v2277
      %v2339 = vunpack.c.l.b16 %v2280
      %v2340 = vunpack.c.l.b16 %v2284
      %v2341 = vunpack.c.l.b16 %v2287
      %v2342 = vunpack.c.l.b16 %v2291
      %v2343 = vunpack.c.l.b16 %v2294
      %v2344 = vunpack.c.l.b16 %v2298
      %v2345 = vunpack.c.l.b16 %v2301
      %v2346 = vunpack.c.l.b16 %v2305
      %v2347 = vunpack.c.l.b16 %v2308
      %v2348 = vunpack.c.l.b16 %v2312
      %v2349 = vunpack.c.l.b16 %v2315
      %v2350 = vpack.c.b16 %v2319, %v2318
      %v2351 = vpack.c.b16 %v2321, %v2320
      %v2352 = vpack.c.b16 %v2323, %v2322
      %v2353 = vpack.c.b16 %v2325, %v2324
      %v2354 = vpack.c.b16 %v2327, %v2326
      %v2355 = vpack.c.b16 %v2329, %v2328
      %v2356 = vpack.c.b16 %v2331, %v2330
      %v2357 = vpack.c.b16 %v2333, %v2332
      %v2358 = vpack.c.b16 %v2335, %v2334
      %v2359 = vpack.c.b16 %v2337, %v2336
      %v2360 = vpack.c.b16 %v2339, %v2338
      %v2361 = vpack.c.b16 %v2341, %v2340
      %v2362 = vpack.c.b16 %v2343, %v2342
      %v2363 = vpack.c.b16 %v2345, %v2344
      %v2364 = vpack.c.b16 %v2347, %v2346
      %v2365 = vpack.c.b16 %v2349, %v2348
      %v2367 = vsel %vm456, %v2350, 0
      %v2370 = vsel %vm456, %v2351, 0
      %v2373 = vsel %vm456, %v2352, 0
      %v2376 = vsel %vm456, %v2353, 0
      %v2379 = vsel %vm456, %v2354, 0
      %v2382 = vsel %vm456, %v2355, 0
      %v2385 = vsel %vm456, %v2356, 0
      %v2388 = vsel %vm456, %v2357, 0
      %v2391 = vsel %vm456, %v2358, 0
      %v2394 = vsel %vm456, %v2359, 0
      %v2397 = vsel %vm456, %v2360, 0
      %v2400 = vsel %vm456, %v2361, 0
      %v2403 = vsel %vm456, %v2362, 0
      %v2406 = vsel %vm456, %v2363, 0
      %v2409 = vsel %vm456, %v2364, 0
      %v2412 = vsel %vm456, %v2365, 0
      %v2415 = vsel %vm505, %v2317, 0
      %2417 = vmatprep.subr.bf16.mxu0 0
      %2418 = vmatpush1.bf16.msra.mxu0 0
      %2419 = vmatprep.subr.bf16.mxu0 0
      %2420 = vmatpush1.bf16.msra.mxu0 0
      %2421 = vmatprep.subr.bf16.mxu0 0
      %2422 = vmatpush1.bf16.msra.mxu0 0
      %2423 = vmatprep.subr.bf16.mxu0 0
      %2424 = vmatpush1.bf16.msra.mxu0 0
      %2425 = vmatprep.subr.bf16.mxu0 0
      %2426 = vmatpush1.bf16.msra.mxu0 0
      %2427 = vmatprep.subr.bf16.mxu0 0
      %2428 = vmatpush1.bf16.msra.mxu0 0
      %2429 = vmatprep.subr.bf16.mxu0 0
      %2430 = vmatpush1.bf16.msra.mxu0 0
      %2431 = vmatprep.subr.bf16.mxu0 0
      %2432 = vmatpush1.bf16.msra.mxu0 %v2415
      %2433 = vmatprep.subr.bf16.mxu0 0
      %2434 = vmatpush2.bf16.msra.mxu0 0
      %2435 = vmatprep.subr.bf16.mxu0 0
      %2436 = vmatpush2.bf16.msra.mxu0 0
      %2437 = vmatprep.subr.bf16.mxu0 0
      %2438 = vmatpush2.bf16.msra.mxu0 0
      %2439 = vmatprep.subr.bf16.mxu0 0
      %2440 = vmatpush2.bf16.msra.mxu0 0
      %2441 = vmatprep.subr.bf16.mxu0 0
      %2442 = vmatpush2.bf16.msra.mxu0 0
      %2443 = vmatprep.subr.bf16.mxu0 0
      %2444 = vmatpush2.bf16.msra.mxu0 0
      %2445 = vmatprep.subr.bf16.mxu0 0
      %2446 = vmatpush2.bf16.msra.mxu0 0
      %2447 = vmatprep.subr.bf16.mxu0 0
      %2448 = vmatpush2.bf16.msra.mxu0 0
      %2449 = vmatprep.mubr.bf16.mxu0 0
      %2450 = vmatmul.mubr.bf16.gmra.mxu0 %v2367
      %v2451 = vpop.f32.mrf.mxu0
      %v2452 = vadd.f32 0.0, %v2451
      %v2453 = vpop.f32.mrf.mxu0
      %v2454 = vpop.f32.mrf.mxu0
      %v2455 = vadd.f32 0.0, %v2454
      %v2456 = vpop.f32.mrf.mxu0
      %2457 = vmatprep.mubr.bf16.mxu0 0
      %2458 = vmatmul.mubr.bf16.gmra.mxu0 %v2370
      %v2459 = vpop.f32.mrf.mxu0
      %v2460 = vadd.f32 0.0, %v2459
      %v2461 = vpop.f32.mrf.mxu0
      %v2462 = vpop.f32.mrf.mxu0
      %v2463 = vadd.f32 0.0, %v2462
      %v2464 = vpop.f32.mrf.mxu0
      %2465 = vmatprep.mubr.bf16.mxu0 0
      %2466 = vmatmul.mubr.bf16.gmra.mxu0 %v2373
      %v2467 = vpop.f32.mrf.mxu0
      %v2468 = vadd.f32 0.0, %v2467
      %v2469 = vpop.f32.mrf.mxu0
      %v2470 = vpop.f32.mrf.mxu0
      %v2471 = vadd.f32 0.0, %v2470
      %v2472 = vpop.f32.mrf.mxu0
      %2473 = vmatprep.mubr.bf16.mxu0 0
      %2474 = vmatmul.mubr.bf16.gmra.mxu0 %v2376
      %v2475 = vpop.f32.mrf.mxu0
      %v2476 = vadd.f32 0.0, %v2475
      %v2477 = vpop.f32.mrf.mxu0
      %v2478 = vpop.f32.mrf.mxu0
      %v2479 = vadd.f32 0.0, %v2478
      %v2480 = vpop.f32.mrf.mxu0
      %2481 = vmatprep.mubr.bf16.mxu0 0
      %2482 = vmatmul.mubr.bf16.gmra.mxu0 %v2379
      %v2483 = vpop.f32.mrf.mxu0
      %v2484 = vadd.f32 0.0, %v2483
      %v2485 = vpop.f32.mrf.mxu0
      %v2486 = vpop.f32.mrf.mxu0
      %v2487 = vadd.f32 0.0, %v2486
      %v2488 = vpop.f32.mrf.mxu0
      %2489 = vmatprep.mubr.bf16.mxu0 0
      %2490 = vmatmul.mubr.bf16.gmra.mxu0 %v2382
      %v2491 = vpop.f32.mrf.mxu0
      %v2492 = vadd.f32 0.0, %v2491
      %v2493 = vpop.f32.mrf.mxu0
      %v2494 = vpop.f32.mrf.mxu0
      %v2495 = vadd.f32 0.0, %v2494
      %v2496 = vpop.f32.mrf.mxu0
      %2497 = vmatprep.mubr.bf16.mxu0 0
      %2498 = vmatmul.mubr.bf16.gmra.mxu0 %v2385
      %v2499 = vpop.f32.mrf.mxu0
      %v2500 = vadd.f32 0.0, %v2499
      %v2501 = vpop.f32.mrf.mxu0
      %v2502 = vpop.f32.mrf.mxu0
      %v2503 = vadd.f32 0.0, %v2502
      %v2504 = vpop.f32.mrf.mxu0
      %2505 = vmatprep.mubr.bf16.mxu0 0
      %2506 = vmatmul.mubr.bf16.gmra.mxu0 %v2388
      %v2507 = vpop.f32.mrf.mxu0
      %v2508 = vadd.f32 0.0, %v2507
      %v2509 = vpop.f32.mrf.mxu0
      %v2510 = vpop.f32.mrf.mxu0
      %v2511 = vadd.f32 0.0, %v2510
      %v2512 = vpop.f32.mrf.mxu0
      %2513 = vmatprep.mubr.bf16.mxu0 0
      %2514 = vmatmul.mubr.bf16.gmra.mxu0 %v2391
      %v2515 = vpop.f32.mrf.mxu0
      %v2516 = vadd.f32 0.0, %v2515
      %v2517 = vpop.f32.mrf.mxu0
      %v2518 = vpop.f32.mrf.mxu0
      %v2519 = vadd.f32 0.0, %v2518
      %v2520 = vpop.f32.mrf.mxu0
      %2521 = vmatprep.mubr.bf16.mxu0 0
      %2522 = vmatmul.mubr.bf16.gmra.mxu0 %v2394
      %v2523 = vpop.f32.mrf.mxu0
      %v2524 = vadd.f32 0.0, %v2523
      %v2525 = vpop.f32.mrf.mxu0
      %v2526 = vpop.f32.mrf.mxu0
      %v2527 = vadd.f32 0.0, %v2526
      %v2528 = vpop.f32.mrf.mxu0
      %2529 = vmatprep.mubr.bf16.mxu0 0
      %2530 = vmatmul.mubr.bf16.gmra.mxu0 %v2397
      %v2531 = vpop.f32.mrf.mxu0
      %v2532 = vadd.f32 0.0, %v2531
      %v2533 = vpop.f32.mrf.mxu0
      %v2534 = vpop.f32.mrf.mxu0
      %v2535 = vadd.f32 0.0, %v2534
      %v2536 = vpop.f32.mrf.mxu0
      %2537 = vmatprep.mubr.bf16.mxu0 0
      %2538 = vmatmul.mubr.bf16.gmra.mxu0 %v2400
      %v2539 = vpop.f32.mrf.mxu0
      %v2540 = vadd.f32 0.0, %v2539
      %v2541 = vpop.f32.mrf.mxu0
      %v2542 = vpop.f32.mrf.mxu0
      %v2543 = vadd.f32 0.0, %v2542
      %v2544 = vpop.f32.mrf.mxu0
      %2545 = vmatprep.mubr.bf16.mxu0 0
      %2546 = vmatmul.mubr.bf16.gmra.mxu0 %v2403
      %v2547 = vpop.f32.mrf.mxu0
      %v2548 = vadd.f32 0.0, %v2547
      %v2549 = vpop.f32.mrf.mxu0
      %v2550 = vpop.f32.mrf.mxu0
      %v2551 = vadd.f32 0.0, %v2550
      %v2552 = vpop.f32.mrf.mxu0
      %2553 = vmatprep.mubr.bf16.mxu0 0
      %2554 = vmatmul.mubr.bf16.gmra.mxu0 %v2406
      %v2555 = vpop.f32.mrf.mxu0
      %v2556 = vadd.f32 0.0, %v2555
      %v2557 = vpop.f32.mrf.mxu0
      %v2558 = vpop.f32.mrf.mxu0
      %v2559 = vadd.f32 0.0, %v2558
      %v2560 = vpop.f32.mrf.mxu0
      %2561 = vmatprep.mubr.bf16.mxu0 0
      %2562 = vmatmul.mubr.bf16.gmra.mxu0 %v2409
      %v2563 = vpop.f32.mrf.mxu0
      %v2564 = vadd.f32 0.0, %v2563
      %v2565 = vpop.f32.mrf.mxu0
      %v2566 = vpop.f32.mrf.mxu0
      %v2567 = vadd.f32 0.0, %v2566
      %v2568 = vpop.f32.mrf.mxu0
      %2569 = vmatprep.mubr.bf16.mxu0 0
      %2570 = vmatmul.mubr.bf16.gmra.mxu0 %v2412
      %v2571 = vpop.f32.mrf.mxu0
      %v2572 = vadd.f32 0.0, %v2571
      %v2573 = vpop.f32.mrf.mxu0
      %v2574 = vpop.f32.mrf.mxu0
      %v2575 = vadd.f32 0.0, %v2574
      %v2576 = vpop.f32.mrf.mxu0
      %2577 = vdwg.mxu0
      %v2578 = vadd.f32 %v2153, %v2452
      %v2579 = vadd.f32 %v2154, %v2455
      %v2580 = vadd.f32 %v2155, %v2460
      %v2581 = vadd.f32 %v2156, %v2463
      %v2582 = vadd.f32 %v2157, %v2468
      %v2583 = vadd.f32 %v2158, %v2471
      %v2584 = vadd.f32 %v2159, %v2476
      %v2585 = vadd.f32 %v2160, %v2479
      %v2586 = vadd.f32 %v2161, %v2484
      %v2587 = vadd.f32 %v2162, %v2487
      %v2588 = vadd.f32 %v2163, %v2492
      %v2589 = vadd.f32 %v2164, %v2495
      %v2590 = vadd.f32 %v2165, %v2500
      %v2591 = vadd.f32 %v2166, %v2503
      %v2592 = vadd.f32 %v2167, %v2508
      %v2593 = vadd.f32 %v2168, %v2511
      %v2594 = vadd.f32 %v2169, %v2516
      %v2595 = vadd.f32 %v2170, %v2519
      %v2596 = vadd.f32 %v2171, %v2524
      %v2597 = vadd.f32 %v2172, %v2527
      %v2598 = vadd.f32 %v2173, %v2532
      %v2599 = vadd.f32 %v2174, %v2535
      %v2600 = vadd.f32 %v2175, %v2540
      %v2601 = vadd.f32 %v2176, %v2543
      %v2602 = vadd.f32 %v2177, %v2548
      %v2603 = vadd.f32 %v2178, %v2551
      %v2604 = vadd.f32 %v2179, %v2556
      %v2605 = vadd.f32 %v2180, %v2559
      %v2606 = vadd.f32 %v2181, %v2564
      %v2607 = vadd.f32 %v2182, %v2567
      %v2608 = vadd.f32 %v2183, %v2572
      %v2609 = vadd.f32 %v2184, %v2575
      %v2611 = vrot.slane %v367, 5
      %v2612 = vrot.slane %v2611, 4
      %v2613 = vrot.slane %v368, 5
      %v2614 = vsel %vm2203, %v2612, %v2613
      %v2615 = vrot.slane %v2613, 4
      %v2616 = vrot.slane %v369, 5
      %v2617 = vsel %vm2203, %v2615, %v2616
      %s2618 = scalar_lea.vmem %s2, 14
      %v2619 = vld [vmem:[%s2618] sm:$0x3]
      %v2620 = vunpack.c.l.b16 %v2614
      %v2621 = vunpack.c.l.b16 %v2617
      %v2622 = vpack.c.b16 %v2621, %v2620
      %v2624 = vsel %vm456, %v2622, 0
      %v2627 = vsel %vm505, %v2619, 0
      %2629 = vmatprep.subr.bf16.mxu0 0
      %2630 = vmatpush1.bf16.msra.mxu0 0
      %2631 = vmatprep.subr.bf16.mxu0 0
      %2632 = vmatpush1.bf16.msra.mxu0 0
      %2633 = vmatprep.subr.bf16.mxu0 0
      %2634 = vmatpush1.bf16.msra.mxu0 0
      %2635 = vmatprep.subr.bf16.mxu0 0
      %2636 = vmatpush1.bf16.msra.mxu0 0
      %2637 = vmatprep.subr.bf16.mxu0 0
      %2638 = vmatpush1.bf16.msra.mxu0 0
      %2639 = vmatprep.subr.bf16.mxu0 0
      %2640 = vmatpush1.bf16.msra.mxu0 0
      %2641 = vmatprep.subr.bf16.mxu0 0
      %2642 = vmatpush1.bf16.msra.mxu0 0
      %2643 = vmatprep.subr.bf16.mxu0 0
      %2644 = vmatpush1.bf16.msra.mxu0 %v2627
      %2645 = vmatprep.subr.bf16.mxu0 0
      %2646 = vmatpush2.bf16.msra.mxu0 0
      %2647 = vmatprep.subr.bf16.mxu0 0
      %2648 = vmatpush2.bf16.msra.mxu0 0
      %2649 = vmatprep.subr.bf16.mxu0 0
      %2650 = vmatpush2.bf16.msra.mxu0 0
      %2651 = vmatprep.subr.bf16.mxu0 0
      %2652 = vmatpush2.bf16.msra.mxu0 0
      %2653 = vmatprep.subr.bf16.mxu0 0
      %2654 = vmatpush2.bf16.msra.mxu0 0
      %2655 = vmatprep.subr.bf16.mxu0 0
      %2656 = vmatpush2.bf16.msra.mxu0 0
      %2657 = vmatprep.subr.bf16.mxu0 0
      %2658 = vmatpush2.bf16.msra.mxu0 0
      %2659 = vmatprep.subr.bf16.mxu0 0
      %2660 = vmatpush2.bf16.msra.mxu0 0
      %2661 = vmatprep.mubr.bf16.mxu0 0
      %2662 = vmatmul.mubr.bf16.gmra.mxu0 %v2370
      %v2663 = vpop.f32.mrf.mxu0
      %v2664 = vadd.f32 0.0, %v2663
      %v2665 = vpop.f32.mrf.mxu0
      %v2666 = vpop.f32.mrf.mxu0
      %v2667 = vadd.f32 0.0, %v2666
      %v2668 = vpop.f32.mrf.mxu0
      %2669 = vmatprep.mubr.bf16.mxu0 0
      %2670 = vmatmul.mubr.bf16.gmra.mxu0 %v2373
      %v2671 = vpop.f32.mrf.mxu0
      %v2672 = vadd.f32 0.0, %v2671
      %v2673 = vpop.f32.mrf.mxu0
      %v2674 = vpop.f32.mrf.mxu0
      %v2675 = vadd.f32 0.0, %v2674
      %v2676 = vpop.f32.mrf.mxu0
      %2677 = vmatprep.mubr.bf16.mxu0 0
      %2678 = vmatmul.mubr.bf16.gmra.mxu0 %v2376
      %v2679 = vpop.f32.mrf.mxu0
      %v2680 = vadd.f32 0.0, %v2679
      %v2681 = vpop.f32.mrf.mxu0
      %v2682 = vpop.f32.mrf.mxu0
      %v2683 = vadd.f32 0.0, %v2682
      %v2684 = vpop.f32.mrf.mxu0
      %2685 = vmatprep.mubr.bf16.mxu0 0
      %2686 = vmatmul.mubr.bf16.gmra.mxu0 %v2379
      %v2687 = vpop.f32.mrf.mxu0
      %v2688 = vadd.f32 0.0, %v2687
      %v2689 = vpop.f32.mrf.mxu0
      %v2690 = vpop.f32.mrf.mxu0
      %v2691 = vadd.f32 0.0, %v2690
      %v2692 = vpop.f32.mrf.mxu0
      %2693 = vmatprep.mubr.bf16.mxu0 0
      %2694 = vmatmul.mubr.bf16.gmra.mxu0 %v2382
      %v2695 = vpop.f32.mrf.mxu0
      %v2696 = vadd.f32 0.0, %v2695
      %v2697 = vpop.f32.mrf.mxu0
      %v2698 = vpop.f32.mrf.mxu0
      %v2699 = vadd.f32 0.0, %v2698
      %v2700 = vpop.f32.mrf.mxu0
      %2701 = vmatprep.mubr.bf16.mxu0 0
      %2702 = vmatmul.mubr.bf16.gmra.mxu0 %v2385
      %v2703 = vpop.f32.mrf.mxu0
      %v2704 = vadd.f32 0.0, %v2703
      %v2705 = vpop.f32.mrf.mxu0
      %v2706 = vpop.f32.mrf.mxu0
      %v2707 = vadd.f32 0.0, %v2706
      %v2708 = vpop.f32.mrf.mxu0
      %2709 = vmatprep.mubr.bf16.mxu0 0
      %2710 = vmatmul.mubr.bf16.gmra.mxu0 %v2388
      %v2711 = vpop.f32.mrf.mxu0
      %v2712 = vadd.f32 0.0, %v2711
      %v2713 = vpop.f32.mrf.mxu0
      %v2714 = vpop.f32.mrf.mxu0
      %v2715 = vadd.f32 0.0, %v2714
      %v2716 = vpop.f32.mrf.mxu0
      %2717 = vmatprep.mubr.bf16.mxu0 0
      %2718 = vmatmul.mubr.bf16.gmra.mxu0 %v2391
      %v2719 = vpop.f32.mrf.mxu0
      %v2720 = vadd.f32 0.0, %v2719
      %v2721 = vpop.f32.mrf.mxu0
      %v2722 = vpop.f32.mrf.mxu0
      %v2723 = vadd.f32 0.0, %v2722
      %v2724 = vpop.f32.mrf.mxu0
      %2725 = vmatprep.mubr.bf16.mxu0 0
      %2726 = vmatmul.mubr.bf16.gmra.mxu0 %v2394
      %v2727 = vpop.f32.mrf.mxu0
      %v2728 = vadd.f32 0.0, %v2727
      %v2729 = vpop.f32.mrf.mxu0
      %v2730 = vpop.f32.mrf.mxu0
      %v2731 = vadd.f32 0.0, %v2730
      %v2732 = vpop.f32.mrf.mxu0
      %2733 = vmatprep.mubr.bf16.mxu0 0
      %2734 = vmatmul.mubr.bf16.gmra.mxu0 %v2397
      %v2735 = vpop.f32.mrf.mxu0
      %v2736 = vadd.f32 0.0, %v2735
      %v2737 = vpop.f32.mrf.mxu0
      %v2738 = vpop.f32.mrf.mxu0
      %v2739 = vadd.f32 0.0, %v2738
      %v2740 = vpop.f32.mrf.mxu0
      %2741 = vmatprep.mubr.bf16.mxu0 0
      %2742 = vmatmul.mubr.bf16.gmra.mxu0 %v2400
      %v2743 = vpop.f32.mrf.mxu0
      %v2744 = vadd.f32 0.0, %v2743
      %v2745 = vpop.f32.mrf.mxu0
      %v2746 = vpop.f32.mrf.mxu0
      %v2747 = vadd.f32 0.0, %v2746
      %v2748 = vpop.f32.mrf.mxu0
      %2749 = vmatprep.mubr.bf16.mxu0 0
      %2750 = vmatmul.mubr.bf16.gmra.mxu0 %v2403
      %v2751 = vpop.f32.mrf.mxu0
      %v2752 = vadd.f32 0.0, %v2751
      %v2753 = vpop.f32.mrf.mxu0
      %v2754 = vpop.f32.mrf.mxu0
      %v2755 = vadd.f32 0.0, %v2754
      %v2756 = vpop.f32.mrf.mxu0
      %2757 = vmatprep.mubr.bf16.mxu0 0
      %2758 = vmatmul.mubr.bf16.gmra.mxu0 %v2406
      %v2759 = vpop.f32.mrf.mxu0
      %v2760 = vadd.f32 0.0, %v2759
      %v2761 = vpop.f32.mrf.mxu0
      %v2762 = vpop.f32.mrf.mxu0
      %v2763 = vadd.f32 0.0, %v2762
      %v2764 = vpop.f32.mrf.mxu0
      %2765 = vmatprep.mubr.bf16.mxu0 0
      %2766 = vmatmul.mubr.bf16.gmra.mxu0 %v2409
      %v2767 = vpop.f32.mrf.mxu0
      %v2768 = vadd.f32 0.0, %v2767
      %v2769 = vpop.f32.mrf.mxu0
      %v2770 = vpop.f32.mrf.mxu0
      %v2771 = vadd.f32 0.0, %v2770
      %v2772 = vpop.f32.mrf.mxu0
      %2773 = vmatprep.mubr.bf16.mxu0 0
      %2774 = vmatmul.mubr.bf16.gmra.mxu0 %v2412
      %v2775 = vpop.f32.mrf.mxu0
      %v2776 = vadd.f32 0.0, %v2775
      %v2777 = vpop.f32.mrf.mxu0
      %v2778 = vpop.f32.mrf.mxu0
      %v2779 = vadd.f32 0.0, %v2778
      %v2780 = vpop.f32.mrf.mxu0
      %2781 = vmatprep.mubr.bf16.mxu0 0
      %2782 = vmatmul.mubr.bf16.gmra.mxu0 %v2624
      %v2783 = vpop.f32.mrf.mxu0
      %v2784 = vadd.f32 0.0, %v2783
      %v2785 = vpop.f32.mrf.mxu0
      %v2786 = vpop.f32.mrf.mxu0
      %v2787 = vadd.f32 0.0, %v2786
      %v2788 = vpop.f32.mrf.mxu0
      %2789 = vdwg.mxu0
      %v2790 = vadd.f32 %v2578, %v2664
      %v2791 = vadd.f32 %v2579, %v2667
      %v2792 = vadd.f32 %v2580, %v2672
      %v2793 = vadd.f32 %v2581, %v2675
      %v2794 = vadd.f32 %v2582, %v2680
      %v2795 = vadd.f32 %v2583, %v2683
      %v2796 = vadd.f32 %v2584, %v2688
      %v2797 = vadd.f32 %v2585, %v2691
      %v2798 = vadd.f32 %v2586, %v2696
      %v2799 = vadd.f32 %v2587, %v2699
      %v2800 = vadd.f32 %v2588, %v2704
      %v2801 = vadd.f32 %v2589, %v2707
      %v2802 = vadd.f32 %v2590, %v2712
      %v2803 = vadd.f32 %v2591, %v2715
      %v2804 = vadd.f32 %v2592, %v2720
      %v2805 = vadd.f32 %v2593, %v2723
      %v2806 = vadd.f32 %v2594, %v2728
      %v2807 = vadd.f32 %v2595, %v2731
      %v2808 = vadd.f32 %v2596, %v2736
      %v2809 = vadd.f32 %v2597, %v2739
      %v2810 = vadd.f32 %v2598, %v2744
      %v2811 = vadd.f32 %v2599, %v2747
      %v2812 = vadd.f32 %v2600, %v2752
      %v2813 = vadd.f32 %v2601, %v2755
      %v2814 = vadd.f32 %v2602, %v2760
      %v2815 = vadd.f32 %v2603, %v2763
      %v2816 = vadd.f32 %v2604, %v2768
      %v2817 = vadd.f32 %v2605, %v2771
      %v2818 = vadd.f32 %v2606, %v2776
      %v2819 = vadd.f32 %v2607, %v2779
      %v2820 = vadd.f32 %v2608, %v2784
      %v2821 = vadd.f32 %v2609, %v2787
      %v2823 = vrot.slane %v370, 5
      %v2824 = vrot.slane %v2823, 4
      %v2825 = vrot.slane %v371, 5
      %v2826 = vsel %vm2203, %v2824, %v2825
      %v2827 = vrot.slane %v2825, 4
      %v2828 = vrot.slane %v372, 5
      %v2829 = vsel %vm2203, %v2827, %v2828
      %s2830 = scalar_lea.vmem %s2, 16
      %v2831 = vld [vmem:[%s2830] sm:$0x3]
      %v2832 = vunpack.c.l.b16 %v2826
      %v2833 = vunpack.c.l.b16 %v2829
      %v2834 = vpack.c.b16 %v2833, %v2832
      %v2836 = vsel %vm456, %v2834, 0
      %v2839 = vsel %vm505, %v2831, 0
      %2841 = vmatprep.subr.bf16.mxu0 0
      %2842 = vmatpush1.bf16.msra.mxu0 0
      %2843 = vmatprep.subr.bf16.mxu0 0
      %2844 = vmatpush1.bf16.msra.mxu0 0
      %2845 = vmatprep.subr.bf16.mxu0 0
      %2846 = vmatpush1.bf16.msra.mxu0 0
      %2847 = vmatprep.subr.bf16.mxu0 0
      %2848 = vmatpush1.bf16.msra.mxu0 0
      %2849 = vmatprep.subr.bf16.mxu0 0
      %2850 = vmatpush1.bf16.msra.mxu0 0
      %2851 = vmatprep.subr.bf16.mxu0 0
      %2852 = vmatpush1.bf16.msra.mxu0 0
      %2853 = vmatprep.subr.bf16.mxu0 0
      %2854 = vmatpush1.bf16.msra.mxu0 0
      %2855 = vmatprep.subr.bf16.mxu0 0
      %2856 = vmatpush1.bf16.msra.mxu0 %v2839
      %2857 = vmatprep.subr.bf16.mxu0 0
      %2858 = vmatpush2.bf16.msra.mxu0 0
      %2859 = vmatprep.subr.bf16.mxu0 0
      %2860 = vmatpush2.bf16.msra.mxu0 0
      %2861 = vmatprep.subr.bf16.mxu0 0
      %2862 = vmatpush2.bf16.msra.mxu0 0
      %2863 = vmatprep.subr.bf16.mxu0 0
      %2864 = vmatpush2.bf16.msra.mxu0 0
      %2865 = vmatprep.subr.bf16.mxu0 0
      %2866 = vmatpush2.bf16.msra.mxu0 0
      %2867 = vmatprep.subr.bf16.mxu0 0
      %2868 = vmatpush2.bf16.msra.mxu0 0
      %2869 = vmatprep.subr.bf16.mxu0 0
      %2870 = vmatpush2.bf16.msra.mxu0 0
      %2871 = vmatprep.subr.bf16.mxu0 0
      %2872 = vmatpush2.bf16.msra.mxu0 0
      %2873 = vmatprep.mubr.bf16.mxu0 0
      %2874 = vmatmul.mubr.bf16.gmra.mxu0 %v2373
      %v2875 = vpop.f32.mrf.mxu0
      %v2876 = vadd.f32 0.0, %v2875
      %v2877 = vpop.f32.mrf.mxu0
      %v2878 = vpop.f32.mrf.mxu0
      %v2879 = vadd.f32 0.0, %v2878
      %v2880 = vpop.f32.mrf.mxu0
      %2881 = vmatprep.mubr.bf16.mxu0 0
      %2882 = vmatmul.mubr.bf16.gmra.mxu0 %v2376
      %v2883 = vpop.f32.mrf.mxu0
      %v2884 = vadd.f32 0.0, %v2883
      %v2885 = vpop.f32.mrf.mxu0
      %v2886 = vpop.f32.mrf.mxu0
      %v2887 = vadd.f32 0.0, %v2886
      %v2888 = vpop.f32.mrf.mxu0
      %2889 = vmatprep.mubr.bf16.mxu0 0
      %2890 = vmatmul.mubr.bf16.gmra.mxu0 %v2379
      %v2891 = vpop.f32.mrf.mxu0
      %v2892 = vadd.f32 0.0, %v2891
      %v2893 = vpop.f32.mrf.mxu0
      %v2894 = vpop.f32.mrf.mxu0
      %v2895 = vadd.f32 0.0, %v2894
      %v2896 = vpop.f32.mrf.mxu0
      %2897 = vmatprep.mubr.bf16.mxu0 0
      %2898 = vmatmul.mubr.bf16.gmra.mxu0 %v2382
      %v2899 = vpop.f32.mrf.mxu0
      %v2900 = vadd.f32 0.0, %v2899
      %v2901 = vpop.f32.mrf.mxu0
      %v2902 = vpop.f32.mrf.mxu0
      %v2903 = vadd.f32 0.0, %v2902
      %v2904 = vpop.f32.mrf.mxu0
      %2905 = vmatprep.mubr.bf16.mxu0 0
      %2906 = vmatmul.mubr.bf16.gmra.mxu0 %v2385
      %v2907 = vpop.f32.mrf.mxu0
      %v2908 = vadd.f32 0.0, %v2907
      %v2909 = vpop.f32.mrf.mxu0
      %v2910 = vpop.f32.mrf.mxu0
      %v2911 = vadd.f32 0.0, %v2910
      %v2912 = vpop.f32.mrf.mxu0
      %2913 = vmatprep.mubr.bf16.mxu0 0
      %2914 = vmatmul.mubr.bf16.gmra.mxu0 %v2388
      %v2915 = vpop.f32.mrf.mxu0
      %v2916 = vadd.f32 0.0, %v2915
      %v2917 = vpop.f32.mrf.mxu0
      %v2918 = vpop.f32.mrf.mxu0
      %v2919 = vadd.f32 0.0, %v2918
      %v2920 = vpop.f32.mrf.mxu0
      %2921 = vmatprep.mubr.bf16.mxu0 0
      %2922 = vmatmul.mubr.bf16.gmra.mxu0 %v2391
      %v2923 = vpop.f32.mrf.mxu0
      %v2924 = vadd.f32 0.0, %v2923
      %v2925 = vpop.f32.mrf.mxu0
      %v2926 = vpop.f32.mrf.mxu0
      %v2927 = vadd.f32 0.0, %v2926
      %v2928 = vpop.f32.mrf.mxu0
      %2929 = vmatprep.mubr.bf16.mxu0 0
      %2930 = vmatmul.mubr.bf16.gmra.mxu0 %v2394
      %v2931 = vpop.f32.mrf.mxu0
      %v2932 = vadd.f32 0.0, %v2931
      %v2933 = vpop.f32.mrf.mxu0
      %v2934 = vpop.f32.mrf.mxu0
      %v2935 = vadd.f32 0.0, %v2934
      %v2936 = vpop.f32.mrf.mxu0
      %2937 = vmatprep.mubr.bf16.mxu0 0
      %2938 = vmatmul.mubr.bf16.gmra.mxu0 %v2397
      %v2939 = vpop.f32.mrf.mxu0
      %v2940 = vadd.f32 0.0, %v2939
      %v2941 = vpop.f32.mrf.mxu0
      %v2942 = vpop.f32.mrf.mxu0
      %v2943 = vadd.f32 0.0, %v2942
      %v2944 = vpop.f32.mrf.mxu0
      %2945 = vmatprep.mubr.bf16.mxu0 0
      %2946 = vmatmul.mubr.bf16.gmra.mxu0 %v2400
      %v2947 = vpop.f32.mrf.mxu0
      %v2948 = vadd.f32 0.0, %v2947
      %v2949 = vpop.f32.mrf.mxu0
      %v2950 = vpop.f32.mrf.mxu0
      %v2951 = vadd.f32 0.0, %v2950
      %v2952 = vpop.f32.mrf.mxu0
      %2953 = vmatprep.mubr.bf16.mxu0 0
      %2954 = vmatmul.mubr.bf16.gmra.mxu0 %v2403
      %v2955 = vpop.f32.mrf.mxu0
      %v2956 = vadd.f32 0.0, %v2955
      %v2957 = vpop.f32.mrf.mxu0
      %v2958 = vpop.f32.mrf.mxu0
      %v2959 = vadd.f32 0.0, %v2958
      %v2960 = vpop.f32.mrf.mxu0
      %2961 = vmatprep.mubr.bf16.mxu0 0
      %2962 = vmatmul.mubr.bf16.gmra.mxu0 %v2406
      %v2963 = vpop.f32.mrf.mxu0
      %v2964 = vadd.f32 0.0, %v2963
      %v2965 = vpop.f32.mrf.mxu0
      %v2966 = vpop.f32.mrf.mxu0
      %v2967 = vadd.f32 0.0, %v2966
      %v2968 = vpop.f32.mrf.mxu0
      %2969 = vmatprep.mubr.bf16.mxu0 0
      %2970 = vmatmul.mubr.bf16.gmra.mxu0 %v2409
      %v2971 = vpop.f32.mrf.mxu0
      %v2972 = vadd.f32 0.0, %v2971
      %v2973 = vpop.f32.mrf.mxu0
      %v2974 = vpop.f32.mrf.mxu0
      %v2975 = vadd.f32 0.0, %v2974
      %v2976 = vpop.f32.mrf.mxu0
      %2977 = vmatprep.mubr.bf16.mxu0 0
      %2978 = vmatmul.mubr.bf16.gmra.mxu0 %v2412
      %v2979 = vpop.f32.mrf.mxu0
      %v2980 = vadd.f32 0.0, %v2979
      %v2981 = vpop.f32.mrf.mxu0
      %v2982 = vpop.f32.mrf.mxu0
      %v2983 = vadd.f32 0.0, %v2982
      %v2984 = vpop.f32.mrf.mxu0
      %2985 = vmatprep.mubr.bf16.mxu0 0
      %2986 = vmatmul.mubr.bf16.gmra.mxu0 %v2624
      %v2987 = vpop.f32.mrf.mxu0
      %v2988 = vadd.f32 0.0, %v2987
      %v2989 = vpop.f32.mrf.mxu0
      %v2990 = vpop.f32.mrf.mxu0
      %v2991 = vadd.f32 0.0, %v2990
      %v2992 = vpop.f32.mrf.mxu0
      %2993 = vmatprep.mubr.bf16.mxu0 0
      %2994 = vmatmul.mubr.bf16.gmra.mxu0 %v2836
      %v2995 = vpop.f32.mrf.mxu0
      %v2996 = vadd.f32 0.0, %v2995
      %v2997 = vpop.f32.mrf.mxu0
      %v2998 = vpop.f32.mrf.mxu0
      %v2999 = vadd.f32 0.0, %v2998
      %v3000 = vpop.f32.mrf.mxu0
      %3001 = vdwg.mxu0
      %v3002 = vadd.f32 %v2790, %v2876
      %v3003 = vadd.f32 %v2791, %v2879
      %v3004 = vadd.f32 %v2792, %v2884
      %v3005 = vadd.f32 %v2793, %v2887
      %v3006 = vadd.f32 %v2794, %v2892
      %v3007 = vadd.f32 %v2795, %v2895
      %v3008 = vadd.f32 %v2796, %v2900
      %v3009 = vadd.f32 %v2797, %v2903
      %v3010 = vadd.f32 %v2798, %v2908
      %v3011 = vadd.f32 %v2799, %v2911
      %v3012 = vadd.f32 %v2800, %v2916
      %v3013 = vadd.f32 %v2801, %v2919
      %v3014 = vadd.f32 %v2802, %v2924
      %v3015 = vadd.f32 %v2803, %v2927
      %v3016 = vadd.f32 %v2804, %v2932
      %v3017 = vadd.f32 %v2805, %v2935
      %v3018 = vadd.f32 %v2806, %v2940
      %v3019 = vadd.f32 %v2807, %v2943
      %v3020 = vadd.f32 %v2808, %v2948
      %v3021 = vadd.f32 %v2809, %v2951
      %v3022 = vadd.f32 %v2810, %v2956
      %v3023 = vadd.f32 %v2811, %v2959
      %v3024 = vadd.f32 %v2812, %v2964
      %v3025 = vadd.f32 %v2813, %v2967
      %v3026 = vadd.f32 %v2814, %v2972
      %v3027 = vadd.f32 %v2815, %v2975
      %v3028 = vadd.f32 %v2816, %v2980
      %v3029 = vadd.f32 %v2817, %v2983
      %v3030 = vadd.f32 %v2818, %v2988
      %v3031 = vadd.f32 %v2819, %v2991
      %v3032 = vadd.f32 %v2820, %v2996
      %v3033 = vadd.f32 %v2821, %v2999
      %v3034 = vld [vmem:[%s3] sm:$0x1]
      %v3036 = vlaneseq
      %v3037 = vshrl.u32 %v3036, 7
      %v3038 = vsub.s32 0, %v3037
      %v3039 = vrot.slane %v3034, %v3038
      %v3041 = vadd.f32 %v3002, %v3039
      %v3042 = vadd.f32 %v3003, %v3039
      %v3043 = vadd.f32 %v3004, %v3039
      %v3044 = vadd.f32 %v3005, %v3039
      %v3045 = vadd.f32 %v3006, %v3039
      %v3046 = vadd.f32 %v3007, %v3039
      %v3047 = vadd.f32 %v3008, %v3039
      %v3048 = vadd.f32 %v3009, %v3039
      %v3049 = vadd.f32 %v3010, %v3039
      %v3050 = vadd.f32 %v3011, %v3039
      %v3051 = vadd.f32 %v3012, %v3039
      %v3052 = vadd.f32 %v3013, %v3039
      %v3053 = vadd.f32 %v3014, %v3039
      %v3054 = vadd.f32 %v3015, %v3039
      %v3055 = vadd.f32 %v3016, %v3039
      %v3056 = vadd.f32 %v3017, %v3039
      %v3057 = vadd.f32 %v3018, %v3039
      %v3058 = vadd.f32 %v3019, %v3039
      %v3059 = vadd.f32 %v3020, %v3039
      %v3060 = vadd.f32 %v3021, %v3039
      %v3061 = vadd.f32 %v3022, %v3039
      %v3062 = vadd.f32 %v3023, %v3039
      %v3063 = vadd.f32 %v3024, %v3039
      %v3064 = vadd.f32 %v3025, %v3039
      %v3065 = vadd.f32 %v3026, %v3039
      %v3066 = vadd.f32 %v3027, %v3039
      %v3067 = vadd.f32 %v3028, %v3039
      %v3068 = vadd.f32 %v3029, %v3039
      %v3069 = vadd.f32 %v3030, %v3039
      %v3070 = vadd.f32 %v3031, %v3039
      %v3071 = vadd.f32 %v3032, %v3039
      %v3072 = vadd.f32 %v3033, %v3039
      %v3073 = vmax.f32 %v3041, 0.0
      %v3074 = vmax.f32 %v3042, 0.0
      %v3075 = vmax.f32 %v3043, 0.0
      %v3076 = vmax.f32 %v3044, 0.0
      %v3077 = vmax.f32 %v3045, 0.0
      %v3078 = vmax.f32 %v3046, 0.0
      %v3079 = vmax.f32 %v3047, 0.0
      %v3080 = vmax.f32 %v3048, 0.0
      %v3081 = vmax.f32 %v3049, 0.0
      %v3082 = vmax.f32 %v3050, 0.0
      %v3083 = vmax.f32 %v3051, 0.0
      %v3084 = vmax.f32 %v3052, 0.0
      %v3085 = vmax.f32 %v3053, 0.0
      %v3086 = vmax.f32 %v3054, 0.0
      %v3087 = vmax.f32 %v3055, 0.0
      %v3088 = vmax.f32 %v3056, 0.0
      %v3089 = vmax.f32 %v3057, 0.0
      %v3090 = vmax.f32 %v3058, 0.0
      %v3091 = vmax.f32 %v3059, 0.0
      %v3092 = vmax.f32 %v3060, 0.0
      %v3093 = vmax.f32 %v3061, 0.0
      %v3094 = vmax.f32 %v3062, 0.0
      %v3095 = vmax.f32 %v3063, 0.0
      %v3096 = vmax.f32 %v3064, 0.0
      %v3097 = vmax.f32 %v3065, 0.0
      %v3098 = vmax.f32 %v3066, 0.0
      %v3099 = vmax.f32 %v3067, 0.0
      %v3100 = vmax.f32 %v3068, 0.0
      %v3101 = vmax.f32 %v3069, 0.0
      %v3102 = vmax.f32 %v3070, 0.0
      %v3103 = vmax.f32 %v3071, 0.0
      %v3104 = vmax.f32 %v3072, 0.0
      %3105 = vxpose.xlu0.b32.start [1/16] %v3073, 128
      %3106 = vxpose.xlu0.b32.cont [2/16] %v3074, 128
      %3107 = vxpose.xlu0.b32.cont [3/16] %v3075, 128
      %3108 = vxpose.xlu0.b32.cont [4/16] %v3076, 128
      %3109 = vxpose.xlu0.b32.cont [5/16] %v3077, 128
      %3110 = vxpose.xlu0.b32.cont [6/16] %v3078, 128
      %3111 = vxpose.xlu0.b32.cont [7/16] %v3079, 128
      %3112 = vxpose.xlu0.b32.cont [8/16] %v3080, 128
      %3113 = vxpose.xlu0.b32.cont [9/16] %v3081, 128
      %3114 = vxpose.xlu0.b32.cont [10/16] %v3082, 128
      %3115 = vxpose.xlu0.b32.cont [11/16] %v3083, 128
      %3116 = vxpose.xlu0.b32.cont [12/16] %v3084, 128
      %3117 = vxpose.xlu0.b32.cont [13/16] %v3085, 128
      %3118 = vxpose.xlu0.b32.cont [14/16] %v3086, 128
      %3119 = vxpose.xlu0.b32.cont [15/16] %v3087, 128
      %3120 = vxpose.xlu0.b32.end [16/16] %v3088, 128
      %v3121 = vpop.trf.xlu0
      %v3122 = vpop.trf.xlu0
      %v3123 = vpop.trf.xlu0
      %v3124 = vpop.trf.xlu0
      %v3125 = vpop.trf.xlu0
      %v3126 = vpop.trf.xlu0
      %v3127 = vpop.trf.xlu0
      %v3128 = vpop.trf.xlu0
      %v3129 = vpop.trf.xlu0
      %v3130 = vpop.trf.xlu0
      %v3131 = vpop.trf.xlu0
      %v3132 = vpop.trf.xlu0
      %v3133 = vpop.trf.xlu0
      %v3134 = vpop.trf.xlu0
      %v3135 = vpop.trf.xlu0
      %v3136 = vpop.trf.xlu0
      %3137 = vxpose.xlu0.b32.start [1/16] %v3089, 128
      %3138 = vxpose.xlu0.b32.cont [2/16] %v3090, 128
      %3139 = vxpose.xlu0.b32.cont [3/16] %v3091, 128
      %3140 = vxpose.xlu0.b32.cont [4/16] %v3092, 128
      %3141 = vxpose.xlu0.b32.cont [5/16] %v3093, 128
      %3142 = vxpose.xlu0.b32.cont [6/16] %v3094, 128
      %3143 = vxpose.xlu0.b32.cont [7/16] %v3095, 128
      %3144 = vxpose.xlu0.b32.cont [8/16] %v3096, 128
      %3145 = vxpose.xlu0.b32.cont [9/16] %v3097, 128
      %3146 = vxpose.xlu0.b32.cont [10/16] %v3098, 128
      %3147 = vxpose.xlu0.b32.cont [11/16] %v3099, 128
      %3148 = vxpose.xlu0.b32.cont [12/16] %v3100, 128
      %3149 = vxpose.xlu0.b32.cont [13/16] %v3101, 128
      %3150 = vxpose.xlu0.b32.cont [14/16] %v3102, 128
      %3151 = vxpose.xlu0.b32.cont [15/16] %v3103, 128
      %3152 = vxpose.xlu0.b32.end [16/16] %v3104, 128
      %v3153 = vpop.trf.xlu0
      %v3154 = vpop.trf.xlu0
      %v3155 = vpop.trf.xlu0
      %v3156 = vpop.trf.xlu0
      %v3157 = vpop.trf.xlu0
      %v3158 = vpop.trf.xlu0
      %v3159 = vpop.trf.xlu0
      %v3160 = vpop.trf.xlu0
      %v3161 = vpop.trf.xlu0
      %v3162 = vpop.trf.xlu0
      %v3163 = vpop.trf.xlu0
      %v3164 = vpop.trf.xlu0
      %v3165 = vpop.trf.xlu0
      %v3166 = vpop.trf.xlu0
      %v3167 = vpop.trf.xlu0
      %v3168 = vpop.trf.xlu0
      %3169 = vst [vmem:[%s316] sm:$0xff] %v3121
      %3170 = vst [vmem:[%s316 + $0x8] sm:$0xff] %v3153
      %s3171 = smul.u32 2, %s20
      %p3172 = scmp.lt.s32.totalorder %s19, 1
      %s3173 = scalar_select %p3172, %s19, 1
      %p3174 = scmp.lt.s32.totalorder %s3171, 1
      %s3175 = scalar_select %p3174, %s3171, 1
      %s3176 = smul.addr %s3173, 2
      %s3177 = sadd.s32 %s3175, %s3176
      %s3178 = smul.addr %s3177, 8
      %s3179 = scalar_lea.vmem %s4, %s3178
      // Predicated region
      $region37: #{_lambda_.1} parent=35 // pred_check
        %p3180 = pneg %p149
      $region38: #{_lambda_.1} parent=35 // pred_check_branch
        %3182 = sbr.rel (%p3180) target = $region40
      $region39: #{_lambda_.1} parent=35 // pred_region
        %s3183 = smul.u32 2, %s20
      $region40: #{_lambda_.1} parent=35 // pred_fallthru
        _
    $region36: #{_lambda_.1} parent=5 // pred_fallthru
      _
    %p3184 = scmp.le.s32.totalorder 2, %s10
    // Predicated region
    $region41: #{_lambda_.1} parent=5 // pred_check
      %p3185 = pneg %p3184
    $region42: #{_lambda_.1} parent=5 // pred_check_branch
      %3187 = sbr.rel (%p3185) target = $region44
    $region43: #{_lambda_.1} parent=5 // pred_region
      %s3188 = ssub.s32 %s10, 2
      // Predicated region
      $region45: #{_lambda_.1} parent=43 // pred_check
        %p3189 = pneg %p155
      $region46: #{_lambda_.1} parent=43 // pred_check_branch
        %3191 = sbr.rel (%p3189) target = $region48
      $region47: #{_lambda_.1} parent=43 // pred_region
        %s3192 = smul.u32 2, %s22
        %p3193 = scmp.lt.s32.totalorder %s21, 1
        %s3194 = scalar_select %p3193, %s21, 1
        %p3195 = scmp.lt.s32.totalorder %s3192, 1
        %s3196 = scalar_select %p3195, %s3192, 1
        %s3197 = smul.addr %s3194, 2
        %s3198 = sadd.s32 %s3196, %s3197
        %s3199 = smul.addr %s3198, 8
        %s3200 = scalar_lea.vmem %s4, %s3199
      $region48: #{_lambda_.1} parent=43 // pred_fallthru
        _
    $region44: #{_lambda_.1} parent=5 // pred_fallthru
      _
  $region6: #{_lambda_.1} parent=0 // loop_footer
    %s14 = sadd.s32 1, %s10
  $region7: #{_lambda_.1} parent=0 // loop_footer_branch
    %9 = sbr.rel target = $region3
  $region8: #{_lambda_.1} parent=0 // loop_exit
    _

</llo_original>
